<compile_context>
chip_gen: v7x
topology: tpu7x:2x2x1
jax: 0.10.0
libtpu: 0.0.40
codegen_flags: <defaults>
</compile_context>

<pallas_src>
import functools

import jax
import jax.numpy as jnp
from jax.experimental import pallas as pl
from jax.experimental.pallas import tpu as pltpu


def _round_up(x, m):
    return ((x + m - 1) // m) * m


def _cdiv(a, b):
    return -(-a // b)


def _onehot_gather_kernel(idx_ref, table_ref, out_ref):
    """One grid step: gather R rows from one N-chunk via a one-hot MXU matmul.

    idx_ref   : VMEM int32  [1, R, 1]  flat ids for this row tile (sublane-major)
    table_ref : VMEM float32[NC, D]    current N-chunk of the zero-padded table
    out_ref   : VMEM float32[R, D]     output tile, resident across the N-chunk axis
    """
    k = pl.program_id(1)                       # N-chunk index (reduction axis)
    nc = table_ref.shape[0]
    r = idx_ref.shape[1]

    idx = idx_ref[0]                           # (R, 1) ids, one per sublane row
    local = idx - k * nc                       # ids relative to this chunk
    iota = jax.lax.broadcasted_iota(jnp.int32, (r, nc), 1)
    one_hot = (iota == local).astype(table_ref.dtype)          # (R, NC)

    # (R, NC) @ (NC, D) -> (R, D) on the MXU.  precision=HIGHEST keeps the f32
    # gather bit-exact (one-hot values are exactly 0/1).
    partial = jnp.dot(
        one_hot,
        table_ref[...],
        preferred_element_type=jnp.float32,
        precision=jax.lax.Precision.HIGHEST,
    )

    @pl.when(k == 0)
    def _init():
        out_ref[...] = jnp.zeros_like(out_ref)

    out_ref[...] += partial.astype(out_ref.dtype)


def _choose_row_tiling(m, rows_per_block):
    """Pick (num_row_tiles g, rows_per_tile r, padded_rows m_pad)."""
    m128 = _round_up(max(m, 1), 128)
    rpb = max(128, _round_up(rows_per_block, 128))
    g = _cdiv(m128, rpb)
    # v7x megacore: give the "parallel" row axis >= 2 tiles for mid/large m.
    if g == 1 and m128 >= 512:
        g = 2
    # Balance rows across tiles so tail padding is < 128 rows per tile
    # (instead of rounding m up to a full multiple of rows_per_block).
    r = _round_up(_cdiv(m128, g), 128)
    return g, r, g * r


def _prepare_table(table, n_chunk):
    """Zero-pad the (N, D) table along N to a multiple of n_chunk.

    Hoist this out of the per-call path (do it once per weight update)."""
    n, d = table.shape
    n_pad = _round_up(n, n_chunk)
    if n_pad != n:
        table = jnp.concatenate(
            [table, jnp.zeros((n_pad - n, d), table.dtype)], axis=0
        )
    return table


@functools.partial(
    jax.jit, static_argnames=("n_valid", "n_chunk", "rows_per_block")
)
def _poincare_lookup_padded(indices, table_padded, *, n_valid, n_chunk,
                            rows_per_block=1024):
    """Embedding lookup on a pre-padded (n_pad, D) table.  n_pad % n_chunk == 0."""
    orig_shape = indices.shape
    n_pad, d = table_padded.shape
    n_chunks = n_pad // n_chunk

    idx = indices.reshape(-1).astype(jnp.int32)
    # nn.Embedding raises on out-of-range ids; here we clamp (intentional).
    idx = jnp.clip(idx, 0, n_valid - 1)
    m = idx.shape[0]

    g, r, m_pad = _choose_row_tiling(m, rows_per_block)
    if m_pad != m:
        idx = jnp.concatenate([idx, jnp.zeros((m_pad - m,), jnp.int32)], axis=0)
    # (g, R, 1): ids live on sublanes so the one-hot compare needs no relayout.
    idx_blocks = idx.reshape(g, r, 1)

    out = pl.pallas_call(
        _onehot_gather_kernel,
        out_shape=jax.ShapeDtypeStruct((m_pad, d), table_padded.dtype),
        grid_spec=pltpu.PrefetchScalarGridSpec(
            num_scalar_prefetch=0,
            grid=(g, n_chunks),                 # reduction (N-chunk) axis last
            in_specs=[
                # Row-tile ids: re-fetched only when the row tile changes.
                pl.BlockSpec((1, r, 1), lambda i, k: (i, 0, 0)),
                # Table streamed one N-chunk at a time (double-buffered by the
                # pipeline); constant block when n_chunks == 1 -> fetched once.
                pl.BlockSpec((n_chunk, d), lambda i, k: (k, 0)),
            ],
            # Output tile resident across the N-chunk (accumulation) axis.
            out_specs=pl.BlockSpec((r, d), lambda i, k: (i, 0)),
        ),
        compiler_params=pltpu.CompilerParams(
            # Row tiles are independent (disjoint output, read-only table);
            # N-chunk axis is the sequential reduction.
            dimension_semantics=("parallel", "arbitrary"),
            vmem_limit_bytes=32 * 1024 * 1024,
        ),
    )(idx_blocks, table_padded)

    return out[:m].reshape(orig_shape + (d,))


def poincare_embedding_lookup(indices, table, *, rows_per_block=1024,
                              n_chunk=1024):
    """Convenience wrapper taking the raw (N, D) table.

    For repeated calls with the same weights, prefer RiemannianEmbeddingPallas,
    which hoists the table padding out of the per-call path."""
    n, _ = table.shape
    nc = min(int(n_chunk), _round_up(n, 128))
    table_padded = _prepare_table(table, nc)
    return _poincare_lookup_padded(
        indices, table_padded, n_valid=n, n_chunk=nc,
        rows_per_block=rows_per_block)


def make_poincare_weights(key, n_exemple, size):
    """Deterministic init mimicking PoincareEmbedding: tiny uniform points
    strictly inside the Poincaré ball (||w|| << 1)."""
    return jax.random.uniform(
        key, (n_exemple, size), dtype=jnp.float32, minval=-1e-3, maxval=1e-3
    )


class RiemannianEmbeddingPallas:
    """forward(x) = embedding lookup W(x); fit()/optimizer/negative sampling are
    training-only and out of scope for the forward-pass kernel."""

    def __init__(self, n_exemple, size=10, key=None, *, rows_per_block=1024,
                 n_chunk=1024):
        self.N = int(n_exemple)
        self.size = int(size)
        if key is None:
            key = jax.random.PRNGKey(0)
        self.weight = make_poincare_weights(key, self.N, self.size)
        self._rows_per_block = int(rows_per_block)
        self._n_chunk = min(int(n_chunk), _round_up(self.N, 128))
        # Perf: table prep (zero-pad of the N axis, no transpose needed with the
        # natural out = one_hot @ table orientation) is done ONCE here, not per
        # forward() call.
        self._table_padded = _prepare_table(self.weight, self._n_chunk)

    def forward(self, x):
        return _poincare_lookup_padded(
            x, self._table_padded, n_valid=self.N, n_chunk=self._n_chunk,
            rows_per_block=self._rows_per_block)

    __call__ = forward

    def get_PoincareEmbeddings(self):
        return self.forward(jnp.arange(self.N))


if __name__ == "__main__":
    key = jax.random.PRNGKey(0)
    k_w, k_x, k_w2, k_x2, k_w3, k_x3 = jax.random.split(key, 6)

    # --- Test 1: aligned embedding size --------------------------------------
    N, D = 64, 16
    B, S = 2, 8
    model = RiemannianEmbeddingPallas(N, size=D, key=k_w)
    x = jax.random.randint(k_x, (B, S), minval=0, maxval=N, dtype=jnp.int32)

    out = jax.block_until_ready(model.forward(x))
    ref = model.weight[x]
    assert out.shape == (B, S, D), out.shape
    assert jnp.allclose(out, ref), "mismatch vs reference gather (test 1)"

    # --- Test 2: default size=10 (unaligned D, unaligned N, ragged batch) ----
    N2, D2 = 100, 10
    model2 = RiemannianEmbeddingPallas(N2, size=D2, key=k_w2)
    x2 = jax.random.randint(k_x2, (3, 7), minval=0, maxval=N2, dtype=jnp.int32)

    out2 = jax.block_until_ready(model2.forward(x2))
    ref2 = model2.weight[x2]
    assert out2.shape == (3, 7, D2), out2.shape
    assert jnp.allclose(out2, ref2), "mismatch vs reference gather (test 2)"

    all_emb2 = jax.block_until_ready(model2.get_PoincareEmbeddings())
    assert jnp.allclose(all_emb2, model2.weight), "mismatch in get_PoincareEmbeddings (test 2)"

    # --- Test 3: multi N-chunk reduction + multi row-tile path ---------------
    # Small n_chunk forces the chunked accumulation (grid axis 1 > 1); m=520
    # forces >= 2 row tiles with a balanced, ragged last tile.
    N3, D3 = 300, 10
    model3 = RiemannianEmbeddingPallas(N3, size=D3, key=k_w3, n_chunk=128)
    x3 = jax.random.randint(k_x3, (8, 65), minval=0, maxval=N3, dtype=jnp.int32)

    out3 = jax.block_until_ready(model3.forward(x3))
    ref3 = model3.weight[x3]
    assert out3.shape == (8, 65, D3), out3.shape
    assert jnp.allclose(out3, ref3), "mismatch vs reference gather (test 3)"

    all_emb3 = jax.block_until_ready(model3.get_PoincareEmbeddings())
    assert jnp.allclose(all_emb3, model3.weight), "mismatch in get_PoincareEmbeddings (test 3)"

    print("KERNEL_OK")
</pallas_src>

<mosaic_0001>
module attributes {stable_mosaic.version = 11 : i64} {
  func.func @_onehot_gather_kernel(%arg0: i32, %arg1: i32, %arg2: memref<1x128x1xi32, #tpu.memory_space<vmem>>, %arg3: memref<128x16xf32, #tpu.memory_space<vmem>>, %arg4: memref<128x16xf32, #tpu.memory_space<vmem>>) attributes {dimension_semantics = [#tpu.dimension_semantics<parallel>, #tpu.dimension_semantics<arbitrary>], iteration_bounds = array<i64: 1, 1>, scalar_prefetch = 0 : i64, scratch_operands = 0 : i64, tpu.core_type = #tpu.core_type<tc>, window_params = [{transform_indices = @transform_0, window_bounds = array<i64: 1, 128, 1>}, {transform_indices = @transform_1, window_bounds = array<i64: 128, 16>}, {transform_indices = @transform_2, window_bounds = array<i64: 128, 16>}]} {
    %c0 = arith.constant 0 : index
    %c0_0 = arith.constant 0 : index
    %c0_1 = arith.constant 0 : index
    %0 = vector.load %arg2[%c0, %c0_0, %c0_1] : memref<1x128x1xi32, #tpu.memory_space<vmem>>, vector<1x128x1xi32>
    %1 = vector.shape_cast %0 : vector<1x128x1xi32> to vector<128x1xi32>
    %c128_i32 = arith.constant 128 : i32
    %2 = arith.muli %arg1, %c128_i32 : i32
    %3 = vector.broadcast %2 : i32 to vector<128x1xi32>
    %4 = arith.subi %1, %3 : vector<128x1xi32>
    %5 = tpu.iota {dimensions = array<i32: 1>} : vector<128x128xi32>
    %6 = vector.broadcast %4 : vector<128x1xi32> to vector<128x128xi32>
    %7 = arith.cmpi eq, %5, %6 : vector<128x128xi32>
    %8 = arith.extui %7 : vector<128x128xi1> to vector<128x128xi32>
    %9 = arith.sitofp %8 : vector<128x128xi32> to vector<128x128xf32>
    %c0_2 = arith.constant 0 : index
    %c0_3 = arith.constant 0 : index
    %10 = vector.load %arg3[%c0_2, %c0_3] : memref<128x16xf32, #tpu.memory_space<vmem>>, vector<128x16xf32>
    %cst = arith.constant dense<0.000000e+00> : vector<128x16xf32>
    %11 = tpu.matmul %9, %10, %cst {dimension_numbers = #tpu.dot_dimension_numbers<[1], [0], [0], [1], [0, 0, 1, 1], [], []>, precision = #tpu.contract_precision<fp32>} : vector<128x128xf32>, vector<128x16xf32>, vector<128x16xf32> -> vector<128x16xf32>
    %c0_i32 = arith.constant 0 : i32
    %12 = arith.cmpi eq, %arg1, %c0_i32 : i32
    %13 = arith.extui %12 : i1 to i32
    %c0_i32_4 = arith.constant 0 : i32
    %14 = arith.cmpi ne, %13, %c0_i32_4 : i32
    scf.if %14 {
      %cst_9 = arith.constant 0.000000e+00 : f32
      %18 = vector.broadcast %cst_9 : f32 to vector<128x16xf32>
      %c0_10 = arith.constant 0 : index
      %c0_11 = arith.constant 0 : index
      %19 = vector.load %arg4[%c0_10, %c0_11] : memref<128x16xf32, #tpu.memory_space<vmem>>, vector<128x16xf32>
      tpu.vector_store %arg4[%c0_10, %c0_11], %18 {strides = array<i32>} : memref<128x16xf32, #tpu.memory_space<vmem>>, vector<128x16xf32>,
    } else {
    }
    %c0_5 = arith.constant 0 : index
    %c0_6 = arith.constant 0 : index
    %15 = vector.load %arg4[%c0_5, %c0_6] : memref<128x16xf32, #tpu.memory_space<vmem>>, vector<128x16xf32>
    %16 = arith.addf %15, %11 : vector<128x16xf32>
    %c0_7 = arith.constant 0 : index
    %c0_8 = arith.constant 0 : index
    %17 = vector.load %arg4[%c0_7, %c0_8] : memref<128x16xf32, #tpu.memory_space<vmem>>, vector<128x16xf32>
    tpu.vector_store %arg4[%c0_7, %c0_8], %16 {strides = array<i32>} : memref<128x16xf32, #tpu.memory_space<vmem>>, vector<128x16xf32>,
    return
  }
  func.func @transform_0(%arg0: i32, %arg1: i32) -> (i32, i32, i32) {
    %c0_i32 = arith.constant 0 : i32
    %c0_i32_0 = arith.constant 0 : i32
    %c0_i32_1 = arith.constant 0 : i32
    return %arg0, %c0_i32, %c0_i32_0 : i32, i32, i32
  }
  func.func @transform_1(%arg0: i32, %arg1: i32) -> (i32, i32) {
    %c0_i32 = arith.constant 0 : i32
    %c0_i32_0 = arith.constant 0 : i32
    return %arg1, %c0_i32 : i32, i32
  }
  func.func @transform_2(%arg0: i32, %arg1: i32) -> (i32, i32) {
    %c0_i32 = arith.constant 0 : i32
    %c0_i32_0 = arith.constant 0 : i32
    return %arg0, %c0_i32 : i32, i32
  }
}

</mosaic_0001>

<llo_original>
// kernel: _poincare_lookup_padded.1
$region0: #{_poincare_lookup_padded.1}
  #allocation0 [shape = 'u32[]', space=smem, size = 0x4, offset = 0x4, fixed_abs, tag = 'smem constant byte address 0x4 - core index']
  #allocation1 [shape = 'u32[144,128]{1,0:T(1,128)}', space=vmem, size = 0x12000, scoped, tag = 'internal scratch']
  %s0 = inlined_call_operand.vmem [shape: s32[1,128,1], index: 0, kind: input, shape index: {}]
  %s1 = inlined_call_operand.vmem [shape: f32[128,16], index: 1, kind: input, shape index: {}]
  %s2 = inlined_call_operand.vmem [shape: f32[128,16], index: 2, kind: output, shape index: {}]
  %s3 = sld [smem:[#allocation0]]
  $region22: #{_poincare_lookup_padded.1} parent=0
    _
  %s5 = ssub.s32 1, %s3
  %s6 = scalar_select 0, %s5, %s3
  // Predicated region
  $region2: #{_poincare_lookup_padded.1} parent=0 // pred_check
    _
  $region3: #{_poincare_lookup_padded.1} parent=0 // pred_check_branch
    %8 = sbr.rel (0) target = $region5
  $region4: #{_poincare_lookup_padded.1} parent=0 // pred_region
    _
  $region5: #{_poincare_lookup_padded.1} parent=0 // pred_fallthru
    _
  // Predicated region
  $region6: #{_poincare_lookup_padded.1} parent=0 // pred_check
    _
  $region7: #{_poincare_lookup_padded.1} parent=0 // pred_check_branch
    %10 = sbr.rel (0) target = $region9
  $region8: #{_poincare_lookup_padded.1} parent=0 // pred_region
    _
  $region9: #{_poincare_lookup_padded.1} parent=0 // pred_fallthru
    _
  %v11 = vld [vmem:[%s0] sm:$0xff]
  %v12 = vld [vmem:[%s0 + $0x8] sm:$0xff]
  %v13 = vld [vmem:[%s0 + $0x10] sm:$0xff]
  %v14 = vld [vmem:[%s0 + $0x18] sm:$0xff]
  %v15 = vld [vmem:[%s0 + $0x20] sm:$0xff]
  %v16 = vld [vmem:[%s0 + $0x28] sm:$0xff]
  %v17 = vld [vmem:[%s0 + $0x30] sm:$0xff]
  %v18 = vld [vmem:[%s0 + $0x38] sm:$0xff]
  %v19 = vld [vmem:[%s0 + $0x40] sm:$0xff]
  %v20 = vld [vmem:[%s0 + $0x48] sm:$0xff]
  %v21 = vld [vmem:[%s0 + $0x50] sm:$0xff]
  %v22 = vld [vmem:[%s0 + $0x58] sm:$0xff]
  %v23 = vld [vmem:[%s0 + $0x60] sm:$0xff]
  %v24 = vld [vmem:[%s0 + $0x68] sm:$0xff]
  %v25 = vld [vmem:[%s0 + $0x70] sm:$0xff]
  %v26 = vld [vmem:[%s0 + $0x78] sm:$0xff]
  %s27 = smul.u32 0, 128
  %v28 = vstv %s27
  %v29 = vsub.s32 %v11, %v28
  %v30 = vsub.s32 %v12, %v28
  %v31 = vsub.s32 %v13, %v28
  %v32 = vsub.s32 %v14, %v28
  %v33 = vsub.s32 %v15, %v28
  %v34 = vsub.s32 %v16, %v28
  %v35 = vsub.s32 %v17, %v28
  %v36 = vsub.s32 %v18, %v28
  %v37 = vsub.s32 %v19, %v28
  %v38 = vsub.s32 %v20, %v28
  %v39 = vsub.s32 %v21, %v28
  %v40 = vsub.s32 %v22, %v28
  %v41 = vsub.s32 %v23, %v28
  %v42 = vsub.s32 %v24, %v28
  %v43 = vsub.s32 %v25, %v28
  %v44 = vsub.s32 %v26, %v28
  %v45 = vlaneseq
  %v46 = vand.u32 %v45, 127
  %47 = vset.pattern.permute.xlu0 0
  %48 = vperm.xlu0 %47, %v29
  %v49 = vpop.permute.xlu0 %48
  %50 = vset.pattern.permute.xlu0 0
  %51 = vperm.xlu0 %50, %v30
  %v52 = vpop.permute.xlu0 %51
  %53 = vset.pattern.permute.xlu0 0
  %54 = vperm.xlu0 %53, %v31
  %v55 = vpop.permute.xlu0 %54
  %56 = vset.pattern.permute.xlu0 0
  %57 = vperm.xlu0 %56, %v32
  %v58 = vpop.permute.xlu0 %57
  %59 = vset.pattern.permute.xlu0 0
  %60 = vperm.xlu0 %59, %v33
  %v61 = vpop.permute.xlu0 %60
  %62 = vset.pattern.permute.xlu0 0
  %63 = vperm.xlu0 %62, %v34
  %v64 = vpop.permute.xlu0 %63
  %65 = vset.pattern.permute.xlu0 0
  %66 = vperm.xlu0 %65, %v35
  %v67 = vpop.permute.xlu0 %66
  %68 = vset.pattern.permute.xlu0 0
  %69 = vperm.xlu0 %68, %v36
  %v70 = vpop.permute.xlu0 %69
  %71 = vset.pattern.permute.xlu0 0
  %72 = vperm.xlu0 %71, %v37
  %v73 = vpop.permute.xlu0 %72
  %74 = vset.pattern.permute.xlu0 0
  %75 = vperm.xlu0 %74, %v38
  %v76 = vpop.permute.xlu0 %75
  %77 = vset.pattern.permute.xlu0 0
  %78 = vperm.xlu0 %77, %v39
  %v79 = vpop.permute.xlu0 %78
  %80 = vset.pattern.permute.xlu0 0
  %81 = vperm.xlu0 %80, %v40
  %v82 = vpop.permute.xlu0 %81
  %83 = vset.pattern.permute.xlu0 0
  %84 = vperm.xlu0 %83, %v41
  %v85 = vpop.permute.xlu0 %84
  %86 = vset.pattern.permute.xlu0 0
  %87 = vperm.xlu0 %86, %v42
  %v88 = vpop.permute.xlu0 %87
  %89 = vset.pattern.permute.xlu0 0
  %90 = vperm.xlu0 %89, %v43
  %v91 = vpop.permute.xlu0 %90
  %92 = vset.pattern.permute.xlu0 0
  %93 = vperm.xlu0 %92, %v44
  %v94 = vpop.permute.xlu0 %93
  %vm95 = vcmp.eq.s32.totalorder %v46, %v49
  %vm96 = vcmp.eq.s32.totalorder %v46, %v52
  %vm97 = vcmp.eq.s32.totalorder %v46, %v55
  %vm98 = vcmp.eq.s32.totalorder %v46, %v58
  %vm99 = vcmp.eq.s32.totalorder %v46, %v61
  %vm100 = vcmp.eq.s32.totalorder %v46, %v64
  %vm101 = vcmp.eq.s32.totalorder %v46, %v67
  %vm102 = vcmp.eq.s32.totalorder %v46, %v70
  %vm103 = vcmp.eq.s32.totalorder %v46, %v73
  %vm104 = vcmp.eq.s32.totalorder %v46, %v76
  %vm105 = vcmp.eq.s32.totalorder %v46, %v79
  %vm106 = vcmp.eq.s32.totalorder %v46, %v82
  %vm107 = vcmp.eq.s32.totalorder %v46, %v85
  %vm108 = vcmp.eq.s32.totalorder %v46, %v88
  %vm109 = vcmp.eq.s32.totalorder %v46, %v91
  %vm110 = vcmp.eq.s32.totalorder %v46, %v94
  %v111 = vsel %vm95, 1, 0
  %v112 = vsel %vm96, 1, 0
  %v113 = vsel %vm97, 1, 0
  %v114 = vsel %vm98, 1, 0
  %v115 = vsel %vm99, 1, 0
  %v116 = vsel %vm100, 1, 0
  %v117 = vsel %vm101, 1, 0
  %v118 = vsel %vm102, 1, 0
  %v119 = vsel %vm103, 1, 0
  %v120 = vsel %vm104, 1, 0
  %v121 = vsel %vm105, 1, 0
  %v122 = vsel %vm106, 1, 0
  %v123 = vsel %vm107, 1, 0
  %v124 = vsel %vm108, 1, 0
  %v125 = vsel %vm109, 1, 0
  %v126 = vsel %vm110, 1, 0
  %v127 = vcvt.s32.f32 %v111
  %v128 = vcvt.s32.f32 %v112
  %v129 = vcvt.s32.f32 %v113
  %v130 = vcvt.s32.f32 %v114
  %v131 = vcvt.s32.f32 %v115
  %v132 = vcvt.s32.f32 %v116
  %v133 = vcvt.s32.f32 %v117
  %v134 = vcvt.s32.f32 %v118
  %v135 = vcvt.s32.f32 %v119
  %v136 = vcvt.s32.f32 %v120
  %v137 = vcvt.s32.f32 %v121
  %v138 = vcvt.s32.f32 %v122
  %v139 = vcvt.s32.f32 %v123
  %v140 = vcvt.s32.f32 %v124
  %v141 = vcvt.s32.f32 %v125
  %v142 = vcvt.s32.f32 %v126
  %v143 = vld [vmem:[%s1] sm:$0xff]
  %v144 = vld [vmem:[%s1 + $0x8] sm:$0xff]
  %v145 = vld [vmem:[%s1 + $0x10] sm:$0xff]
  %v146 = vld [vmem:[%s1 + $0x18] sm:$0xff]
  %v147 = vld [vmem:[%s1 + $0x20] sm:$0xff]
  %v148 = vld [vmem:[%s1 + $0x28] sm:$0xff]
  %v149 = vld [vmem:[%s1 + $0x30] sm:$0xff]
  %v150 = vld [vmem:[%s1 + $0x38] sm:$0xff]
  %v151 = vld [vmem:[%s1 + $0x40] sm:$0xff]
  %v152 = vld [vmem:[%s1 + $0x48] sm:$0xff]
  %v153 = vld [vmem:[%s1 + $0x50] sm:$0xff]
  %v154 = vld [vmem:[%s1 + $0x58] sm:$0xff]
  %v155 = vld [vmem:[%s1 + $0x60] sm:$0xff]
  %v156 = vld [vmem:[%s1 + $0x68] sm:$0xff]
  %v157 = vld [vmem:[%s1 + $0x70] sm:$0xff]
  %v158 = vld [vmem:[%s1 + $0x78] sm:$0xff]
  %159 = vmatprep.subr.mxu0 0.0
  %v160 = vand.u32 %v143, 4294901760
  %161 = vmatpush1.msra.mxu0 %v160
  %162 = vmatprep.subr.mxu0 0.0
  %v163 = vand.u32 %v144, 4294901760
  %164 = vmatpush1.msra.mxu0 %v163
  %165 = vmatprep.subr.mxu0 0.0
  %v166 = vand.u32 %v145, 4294901760
  %167 = vmatpush1.msra.mxu0 %v166
  %168 = vmatprep.subr.mxu0 0.0
  %v169 = vand.u32 %v146, 4294901760
  %170 = vmatpush1.msra.mxu0 %v169
  %171 = vmatprep.subr.mxu0 0.0
  %v172 = vand.u32 %v147, 4294901760
  %173 = vmatpush1.msra.mxu0 %v172
  %174 = vmatprep.subr.mxu0 0.0
  %v175 = vand.u32 %v148, 4294901760
  %176 = vmatpush1.msra.mxu0 %v175
  %177 = vmatprep.subr.mxu0 0.0
  %v178 = vand.u32 %v149, 4294901760
  %179 = vmatpush1.msra.mxu0 %v178
  %180 = vmatprep.subr.mxu0 0.0
  %v181 = vand.u32 %v150, 4294901760
  %182 = vmatpush1.msra.mxu0 %v181
  %183 = vmatprep.subr.mxu0 0.0
  %v184 = vand.u32 %v151, 4294901760
  %185 = vmatpush1.msra.mxu0 %v184
  %186 = vmatprep.subr.mxu0 0.0
  %v187 = vand.u32 %v152, 4294901760
  %188 = vmatpush1.msra.mxu0 %v187
  %189 = vmatprep.subr.mxu0 0.0
  %v190 = vand.u32 %v153, 4294901760
  %191 = vmatpush1.msra.mxu0 %v190
  %192 = vmatprep.subr.mxu0 0.0
  %v193 = vand.u32 %v154, 4294901760
  %194 = vmatpush1.msra.mxu0 %v193
  %195 = vmatprep.subr.mxu0 0.0
  %v196 = vand.u32 %v155, 4294901760
  %197 = vmatpush1.msra.mxu0 %v196
  %198 = vmatprep.subr.mxu0 0.0
  %v199 = vand.u32 %v156, 4294901760
  %200 = vmatpush1.msra.mxu0 %v199
  %201 = vmatprep.subr.mxu0 0.0
  %v202 = vand.u32 %v157, 4294901760
  %203 = vmatpush1.msra.mxu0 %v202
  %204 = vmatprep.subr.mxu0 0.0
  %v205 = vand.u32 %v158, 4294901760
  %206 = vmatpush1.msra.mxu0 %v205
  %207 = vmatprep.subr.mxu0 0.0
  %208 = vmatpush1.msra.mxu0 0.0
  %209 = vmatprep.subr.mxu0 0.0
  %210 = vmatpush1.msra.mxu0 0.0
  %211 = vmatprep.subr.mxu0 0.0
  %212 = vmatpush1.msra.mxu0 0.0
  %213 = vmatprep.subr.mxu0 0.0
  %214 = vmatpush1.msra.mxu0 0.0
  %215 = vmatprep.subr.mxu0 0.0
  %216 = vmatpush1.msra.mxu0 0.0
  %217 = vmatprep.subr.mxu0 0.0
  %218 = vmatpush1.msra.mxu0 0.0
  %219 = vmatprep.subr.mxu0 0.0
  %220 = vmatpush1.msra.mxu0 0.0
  %221 = vmatprep.subr.mxu0 0.0
  %222 = vmatpush1.msra.mxu0 0.0
  %223 = vmatprep.subr.mxu0 0.0
  %224 = vmatpush1.msra.mxu0 0.0
  %225 = vmatprep.subr.mxu0 0.0
  %226 = vmatpush1.msra.mxu0 0.0
  %227 = vmatprep.subr.mxu0 0.0
  %228 = vmatpush1.msra.mxu0 0.0
  %229 = vmatprep.subr.mxu0 0.0
  %230 = vmatpush1.msra.mxu0 0.0
  %231 = vmatprep.subr.mxu0 0.0
  %232 = vmatpush1.msra.mxu0 0.0
  %233 = vmatprep.subr.mxu0 0.0
  %234 = vmatpush1.msra.mxu0 0.0
  %235 = vmatprep.subr.mxu0 0.0
  %236 = vmatpush1.msra.mxu0 0.0
  %237 = vmatprep.subr.mxu0 0.0
  %238 = vmatpush1.msra.mxu0 0.0
  %239 = vmatprep.mubr.f32.mxu0 0.0
  %v240 = vand.u32 %v127, 4294901760
  %v241 = vsub.f32 %v127, %v240
  %v242 = vand.u32 %v241, 4294901760
  %v243 = vsub.f32 %v241, %v242
  %v244 = vand.u32 %v243, 4294901760
  %245 = vmatmul.mubr.f32.gmra.mrb[0].mxu0 %v244
  %v246 = vpop.f32.mrb[0].mxu0
  %v247 = vadd.f32 0.0, %v246
  %v248 = vpop.f32.mrb[0].mxu0
  %249 = vmatprep.mubr.f32.mxu0 0.0
  %v250 = vand.u32 %v128, 4294901760
  %v251 = vsub.f32 %v128, %v250
  %v252 = vand.u32 %v251, 4294901760
  %v253 = vsub.f32 %v251, %v252
  %v254 = vand.u32 %v253, 4294901760
  %255 = vmatmul.mubr.f32.gmra.mrb[0].mxu0 %v254
  %v256 = vpop.f32.mrb[0].mxu0
  %v257 = vadd.f32 0.0, %v256
  %v258 = vpop.f32.mrb[0].mxu0
  %259 = vmatprep.mubr.f32.mxu0 0.0
  %v260 = vand.u32 %v129, 4294901760
  %v261 = vsub.f32 %v129, %v260
  %v262 = vand.u32 %v261, 4294901760
  %v263 = vsub.f32 %v261, %v262
  %v264 = vand.u32 %v263, 4294901760
  %265 = vmatmul.mubr.f32.gmra.mrb[0].mxu0 %v264
  %v266 = vpop.f32.mrb[0].mxu0
  %v267 = vadd.f32 0.0, %v266
  %v268 = vpop.f32.mrb[0].mxu0
  %269 = vmatprep.mubr.f32.mxu0 0.0
  %v270 = vand.u32 %v130, 4294901760
  %v271 = vsub.f32 %v130, %v270
  %v272 = vand.u32 %v271, 4294901760
  %v273 = vsub.f32 %v271, %v272
  %v274 = vand.u32 %v273, 4294901760
  %275 = vmatmul.mubr.f32.gmra.mrb[0].mxu0 %v274
  %v276 = vpop.f32.mrb[0].mxu0
  %v277 = vadd.f32 0.0, %v276
  %v278 = vpop.f32.mrb[0].mxu0
  %279 = vmatprep.mubr.f32.mxu0 0.0
  %v280 = vand.u32 %v131, 4294901760
  %v281 = vsub.f32 %v131, %v280
  %v282 = vand.u32 %v281, 4294901760
  %v283 = vsub.f32 %v281, %v282
  %v284 = vand.u32 %v283, 4294901760
  %285 = vmatmul.mubr.f32.gmra.mrb[0].mxu0 %v284
  %v286 = vpop.f32.mrb[0].mxu0
  %v287 = vadd.f32 0.0, %v286
  %v288 = vpop.f32.mrb[0].mxu0
  %289 = vmatprep.mubr.f32.mxu0 0.0
  %v290 = vand.u32 %v132, 4294901760
  %v291 = vsub.f32 %v132, %v290
  %v292 = vand.u32 %v291, 4294901760
  %v293 = vsub.f32 %v291, %v292
  %v294 = vand.u32 %v293, 4294901760
  %295 = vmatmul.mubr.f32.gmra.mrb[0].mxu0 %v294
  %v296 = vpop.f32.mrb[0].mxu0
  %v297 = vadd.f32 0.0, %v296
  %v298 = vpop.f32.mrb[0].mxu0
  %299 = vmatprep.mubr.f32.mxu0 0.0
  %v300 = vand.u32 %v133, 4294901760
  %v301 = vsub.f32 %v133, %v300
  %v302 = vand.u32 %v301, 4294901760
  %v303 = vsub.f32 %v301, %v302
  %v304 = vand.u32 %v303, 4294901760
  %305 = vmatmul.mubr.f32.gmra.mrb[0].mxu0 %v304
  %v306 = vpop.f32.mrb[0].mxu0
  %v307 = vadd.f32 0.0, %v306
  %v308 = vpop.f32.mrb[0].mxu0
  %309 = vmatprep.mubr.f32.mxu0 0.0
  %v310 = vand.u32 %v134, 4294901760
  %v311 = vsub.f32 %v134, %v310
  %v312 = vand.u32 %v311, 4294901760
  %v313 = vsub.f32 %v311, %v312
  %v314 = vand.u32 %v313, 4294901760
  %315 = vmatmul.mubr.f32.gmra.mrb[0].mxu0 %v314
  %v316 = vpop.f32.mrb[0].mxu0
  %v317 = vadd.f32 0.0, %v316
  %v318 = vpop.f32.mrb[0].mxu0
  %319 = vmatprep.mubr.f32.mxu0 0.0
  %v320 = vand.u32 %v135, 4294901760
  %v321 = vsub.f32 %v135, %v320
  %v322 = vand.u32 %v321, 4294901760
  %v323 = vsub.f32 %v321, %v322
  %v324 = vand.u32 %v323, 4294901760
  %325 = vmatmul.mubr.f32.gmra.mrb[0].mxu0 %v324
  %v326 = vpop.f32.mrb[0].mxu0
  %v327 = vadd.f32 0.0, %v326
  %v328 = vpop.f32.mrb[0].mxu0
  %329 = vmatprep.mubr.f32.mxu0 0.0
  %v330 = vand.u32 %v136, 4294901760
  %v331 = vsub.f32 %v136, %v330
  %v332 = vand.u32 %v331, 4294901760
  %v333 = vsub.f32 %v331, %v332
  %v334 = vand.u32 %v333, 4294901760
  %335 = vmatmul.mubr.f32.gmra.mrb[0].mxu0 %v334
  %v336 = vpop.f32.mrb[0].mxu0
  %v337 = vadd.f32 0.0, %v336
  %v338 = vpop.f32.mrb[0].mxu0
  %339 = vmatprep.mubr.f32.mxu0 0.0
  %v340 = vand.u32 %v137, 4294901760
  %v341 = vsub.f32 %v137, %v340
  %v342 = vand.u32 %v341, 4294901760
  %v343 = vsub.f32 %v341, %v342
  %v344 = vand.u32 %v343, 4294901760
  %345 = vmatmul.mubr.f32.gmra.mrb[0].mxu0 %v344
  %v346 = vpop.f32.mrb[0].mxu0
  %v347 = vadd.f32 0.0, %v346
  %v348 = vpop.f32.mrb[0].mxu0
  %349 = vmatprep.mubr.f32.mxu0 0.0
  %v350 = vand.u32 %v138, 4294901760
  %v351 = vsub.f32 %v138, %v350
  %v352 = vand.u32 %v351, 4294901760
  %v353 = vsub.f32 %v351, %v352
  %v354 = vand.u32 %v353, 4294901760
  %355 = vmatmul.mubr.f32.gmra.mrb[0].mxu0 %v354
  %v356 = vpop.f32.mrb[0].mxu0
  %v357 = vadd.f32 0.0, %v356
  %v358 = vpop.f32.mrb[0].mxu0
  %359 = vmatprep.mubr.f32.mxu0 0.0
  %v360 = vand.u32 %v139, 4294901760
  %v361 = vsub.f32 %v139, %v360
  %v362 = vand.u32 %v361, 4294901760
  %v363 = vsub.f32 %v361, %v362
  %v364 = vand.u32 %v363, 4294901760
  %365 = vmatmul.mubr.f32.gmra.mrb[0].mxu0 %v364
  %v366 = vpop.f32.mrb[0].mxu0
  %v367 = vadd.f32 0.0, %v366
  %v368 = vpop.f32.mrb[0].mxu0
  %369 = vmatprep.mubr.f32.mxu0 0.0
  %v370 = vand.u32 %v140, 4294901760
  %v371 = vsub.f32 %v140, %v370
  %v372 = vand.u32 %v371, 4294901760
  %v373 = vsub.f32 %v371, %v372
  %v374 = vand.u32 %v373, 4294901760
  %375 = vmatmul.mubr.f32.gmra.mrb[0].mxu0 %v374
  %v376 = vpop.f32.mrb[0].mxu0
  %v377 = vadd.f32 0.0, %v376
  %v378 = vpop.f32.mrb[0].mxu0
  %379 = vmatprep.mubr.f32.mxu0 0.0
  %v380 = vand.u32 %v141, 4294901760
  %v381 = vsub.f32 %v141, %v380
  %v382 = vand.u32 %v381, 4294901760
  %v383 = vsub.f32 %v381, %v382
  %v384 = vand.u32 %v383, 4294901760
  %385 = vmatmul.mubr.f32.gmra.mrb[0].mxu0 %v384
  %v386 = vpop.f32.mrb[0].mxu0
  %v387 = vadd.f32 0.0, %v386
  %v388 = vpop.f32.mrb[0].mxu0
  %389 = vmatprep.mubr.f32.mxu0 0.0
  %v390 = vand.u32 %v142, 4294901760
  %v391 = vsub.f32 %v142, %v390
  %v392 = vand.u32 %v391, 4294901760
  %v393 = vsub.f32 %v391, %v392
  %v394 = vand.u32 %v393, 4294901760
  %395 = vmatmul.mubr.f32.gmra.mrb[0].mxu0 %v394
  %v396 = vpop.f32.mrb[0].mxu0
  %v397 = vadd.f32 0.0, %v396
  %v398 = vpop.f32.mrb[0].mxu0
  %399 = vdwg.mxu0
  %400 = vmatprep.subr.mxu0 0.0
  %v401 = vand.u32 %v143, 4294901760
  %v402 = vsub.f32 %v143, %v401
  %v403 = vand.u32 %v402, 4294901760
  %v404 = vsub.f32 %v402, %v403
  %v405 = vand.u32 %v404, 4294901760
  %406 = vmatpush1.msra.mxu0 %v405
  %407 = vmatprep.subr.mxu0 0.0
  %v408 = vand.u32 %v144, 4294901760
  %v409 = vsub.f32 %v144, %v408
  %v410 = vand.u32 %v409, 4294901760
  %v411 = vsub.f32 %v409, %v410
  %v412 = vand.u32 %v411, 4294901760
  %413 = vmatpush1.msra.mxu0 %v412
  %414 = vmatprep.subr.mxu0 0.0
  %v415 = vand.u32 %v145, 4294901760
  %v416 = vsub.f32 %v145, %v415
  %v417 = vand.u32 %v416, 4294901760
  %v418 = vsub.f32 %v416, %v417
  %v419 = vand.u32 %v418, 4294901760
  %420 = vmatpush1.msra.mxu0 %v419
  %421 = vmatprep.subr.mxu0 0.0
  %v422 = vand.u32 %v146, 4294901760
  %v423 = vsub.f32 %v146, %v422
  %v424 = vand.u32 %v423, 4294901760
  %v425 = vsub.f32 %v423, %v424
  %v426 = vand.u32 %v425, 4294901760
  %427 = vmatpush1.msra.mxu0 %v426
  %428 = vmatprep.subr.mxu0 0.0
  %v429 = vand.u32 %v147, 4294901760
  %v430 = vsub.f32 %v147, %v429
  %v431 = vand.u32 %v430, 4294901760
  %v432 = vsub.f32 %v430, %v431
  %v433 = vand.u32 %v432, 4294901760
  %434 = vmatpush1.msra.mxu0 %v433
  %435 = vmatprep.subr.mxu0 0.0
  %v436 = vand.u32 %v148, 4294901760
  %v437 = vsub.f32 %v148, %v436
  %v438 = vand.u32 %v437, 4294901760
  %v439 = vsub.f32 %v437, %v438
  %v440 = vand.u32 %v439, 4294901760
  %441 = vmatpush1.msra.mxu0 %v440
  %442 = vmatprep.subr.mxu0 0.0
  %v443 = vand.u32 %v149, 4294901760
  %v444 = vsub.f32 %v149, %v443
  %v445 = vand.u32 %v444, 4294901760
  %v446 = vsub.f32 %v444, %v445
  %v447 = vand.u32 %v446, 4294901760
  %448 = vmatpush1.msra.mxu0 %v447
  %449 = vmatprep.subr.mxu0 0.0
  %v450 = vand.u32 %v150, 4294901760
  %v451 = vsub.f32 %v150, %v450
  %v452 = vand.u32 %v451, 4294901760
  %v453 = vsub.f32 %v451, %v452
  %v454 = vand.u32 %v453, 4294901760
  %455 = vmatpush1.msra.mxu0 %v454
  %456 = vmatprep.subr.mxu0 0.0
  %v457 = vand.u32 %v151, 4294901760
  %v458 = vsub.f32 %v151, %v457
  %v459 = vand.u32 %v458, 4294901760
  %v460 = vsub.f32 %v458, %v459
  %v461 = vand.u32 %v460, 4294901760
  %462 = vmatpush1.msra.mxu0 %v461
  %463 = vmatprep.subr.mxu0 0.0
  %v464 = vand.u32 %v152, 4294901760
  %v465 = vsub.f32 %v152, %v464
  %v466 = vand.u32 %v465, 4294901760
  %v467 = vsub.f32 %v465, %v466
  %v468 = vand.u32 %v467, 4294901760
  %469 = vmatpush1.msra.mxu0 %v468
  %470 = vmatprep.subr.mxu0 0.0
  %v471 = vand.u32 %v153, 4294901760
  %v472 = vsub.f32 %v153, %v471
  %v473 = vand.u32 %v472, 4294901760
  %v474 = vsub.f32 %v472, %v473
  %v475 = vand.u32 %v474, 4294901760
  %476 = vmatpush1.msra.mxu0 %v475
  %477 = vmatprep.subr.mxu0 0.0
  %v478 = vand.u32 %v154, 4294901760
  %v479 = vsub.f32 %v154, %v478
  %v480 = vand.u32 %v479, 4294901760
  %v481 = vsub.f32 %v479, %v480
  %v482 = vand.u32 %v481, 4294901760
  %483 = vmatpush1.msra.mxu0 %v482
  %484 = vmatprep.subr.mxu0 0.0
  %v485 = vand.u32 %v155, 4294901760
  %v486 = vsub.f32 %v155, %v485
  %v487 = vand.u32 %v486, 4294901760
  %v488 = vsub.f32 %v486, %v487
  %v489 = vand.u32 %v488, 4294901760
  %490 = vmatpush1.msra.mxu0 %v489
  %491 = vmatprep.subr.mxu0 0.0
  %v492 = vand.u32 %v156, 4294901760
  %v493 = vsub.f32 %v156, %v492
  %v494 = vand.u32 %v493, 4294901760
  %v495 = vsub.f32 %v493, %v494
  %v496 = vand.u32 %v495, 4294901760
  %497 = vmatpush1.msra.mxu0 %v496
  %498 = vmatprep.subr.mxu0 0.0
  %v499 = vand.u32 %v157, 4294901760
  %v500 = vsub.f32 %v157, %v499
  %v501 = vand.u32 %v500, 4294901760
  %v502 = vsub.f32 %v500, %v501
  %v503 = vand.u32 %v502, 4294901760
  %504 = vmatpush1.msra.mxu0 %v503
  %505 = vmatprep.subr.mxu0 0.0
  %v506 = vand.u32 %v158, 4294901760
  %v507 = vsub.f32 %v158, %v506
  %v508 = vand.u32 %v507, 4294901760
  %v509 = vsub.f32 %v507, %v508
  %v510 = vand.u32 %v509, 4294901760
  %511 = vmatpush1.msra.mxu0 %v510
  %512 = vmatprep.subr.mxu0 0.0
  %513 = vmatpush1.msra.mxu0 0.0
  %514 = vmatprep.subr.mxu0 0.0
  %515 = vmatpush1.msra.mxu0 0.0
  %516 = vmatprep.subr.mxu0 0.0
  %517 = vmatpush1.msra.mxu0 0.0
  %518 = vmatprep.subr.mxu0 0.0
  %519 = vmatpush1.msra.mxu0 0.0
  %520 = vmatprep.subr.mxu0 0.0
  %521 = vmatpush1.msra.mxu0 0.0
  %522 = vmatprep.subr.mxu0 0.0
  %523 = vmatpush1.msra.mxu0 0.0
  %524 = vmatprep.subr.mxu0 0.0
  %525 = vmatpush1.msra.mxu0 0.0
  %526 = vmatprep.subr.mxu0 0.0
  %527 = vmatpush1.msra.mxu0 0.0
  %528 = vmatprep.subr.mxu0 0.0
  %529 = vmatpush1.msra.mxu0 0.0
  %530 = vmatprep.subr.mxu0 0.0
  %531 = vmatpush1.msra.mxu0 0.0
  %532 = vmatprep.subr.mxu0 0.0
  %533 = vmatpush1.msra.mxu0 0.0
  %534 = vmatprep.subr.mxu0 0.0
  %535 = vmatpush1.msra.mxu0 0.0
  %536 = vmatprep.subr.mxu0 0.0
  %537 = vmatpush1.msra.mxu0 0.0
  %538 = vmatprep.subr.mxu0 0.0
  %539 = vmatpush1.msra.mxu0 0.0
  %540 = vmatprep.subr.mxu0 0.0
  %541 = vmatpush1.msra.mxu0 0.0
  %542 = vmatprep.subr.mxu0 0.0
  %543 = vmatpush1.msra.mxu0 0.0
  %544 = vmatprep.mubr.f32.mxu0 0.0
  %v545 = vand.u32 %v127, 4294901760
  %546 = vmatmul.mubr.f32.gmra.mrb[0].mxu0 %v545
  %v547 = vpop.f32.mrb[0].mxu0
  %v548 = vadd.f32 %v247, %v547
  %v549 = vpop.f32.mrb[0].mxu0
  %550 = vmatprep.mubr.f32.mxu0 0.0
  %v551 = vand.u32 %v128, 4294901760
  %552 = vmatmul.mubr.f32.gmra.mrb[0].mxu0 %v551
  %v553 = vpop.f32.mrb[0].mxu0
  %v554 = vadd.f32 %v257, %v553
  %v555 = vpop.f32.mrb[0].mxu0
  %556 = vmatprep.mubr.f32.mxu0 0.0
  %v557 = vand.u32 %v129, 4294901760
  %558 = vmatmul.mubr.f32.gmra.mrb[0].mxu0 %v557
  %v559 = vpop.f32.mrb[0].mxu0
  %v560 = vadd.f32 %v267, %v559
  %v561 = vpop.f32.mrb[0].mxu0
  %562 = vmatprep.mubr.f32.mxu0 0.0
  %v563 = vand.u32 %v130, 4294901760
  %564 = vmatmul.mubr.f32.gmra.mrb[0].mxu0 %v563
  %v565 = vpop.f32.mrb[0].mxu0
  %v566 = vadd.f32 %v277, %v565
  %v567 = vpop.f32.mrb[0].mxu0
  %568 = vmatprep.mubr.f32.mxu0 0.0
  %v569 = vand.u32 %v131, 4294901760
  %570 = vmatmul.mubr.f32.gmra.mrb[0].mxu0 %v569
  %v571 = vpop.f32.mrb[0].mxu0
  %v572 = vadd.f32 %v287, %v571
  %v573 = vpop.f32.mrb[0].mxu0
  %574 = vmatprep.mubr.f32.mxu0 0.0
  %v575 = vand.u32 %v132, 4294901760
  %576 = vmatmul.mubr.f32.gmra.mrb[0].mxu0 %v575
  %v577 = vpop.f32.mrb[0].mxu0
  %v578 = vadd.f32 %v297, %v577
  %v579 = vpop.f32.mrb[0].mxu0
  %580 = vmatprep.mubr.f32.mxu0 0.0
  %v581 = vand.u32 %v133, 4294901760
  %582 = vmatmul.mubr.f32.gmra.mrb[0].mxu0 %v581
  %v583 = vpop.f32.mrb[0].mxu0
  %v584 = vadd.f32 %v307, %v583
  %v585 = vpop.f32.mrb[0].mxu0
  %586 = vmatprep.mubr.f32.mxu0 0.0
  %v587 = vand.u32 %v134, 4294901760
  %588 = vmatmul.mubr.f32.gmra.mrb[0].mxu0 %v587
  %v589 = vpop.f32.mrb[0].mxu0
  %v590 = vadd.f32 %v317, %v589
  %v591 = vpop.f32.mrb[0].mxu0
  %592 = vmatprep.mubr.f32.mxu0 0.0
  %v593 = vand.u32 %v135, 4294901760
  %594 = vmatmul.mubr.f32.gmra.mrb[0].mxu0 %v593
  %v595 = vpop.f32.mrb[0].mxu0
  %v596 = vadd.f32 %v327, %v595
  %v597 = vpop.f32.mrb[0].mxu0
  %598 = vmatprep.mubr.f32.mxu0 0.0
  %v599 = vand.u32 %v136, 4294901760
  %600 = vmatmul.mubr.f32.gmra.mrb[0].mxu0 %v599
  %v601 = vpop.f32.mrb[0].mxu0
  %v602 = vadd.f32 %v337, %v601
  %v603 = vpop.f32.mrb[0].mxu0
  %604 = vmatprep.mubr.f32.mxu0 0.0
  %v605 = vand.u32 %v137, 4294901760
  %606 = vmatmul.mubr.f32.gmra.mrb[0].mxu0 %v605
  %v607 = vpop.f32.mrb[0].mxu0
  %v608 = vadd.f32 %v347, %v607
  %v609 = vpop.f32.mrb[0].mxu0
  %610 = vmatprep.mubr.f32.mxu0 0.0
  %v611 = vand.u32 %v138, 4294901760
  %612 = vmatmul.mubr.f32.gmra.mrb[0].mxu0 %v611
  %v613 = vpop.f32.mrb[0].mxu0
  %v614 = vadd.f32 %v357, %v613
  %v615 = vpop.f32.mrb[0].mxu0
  %616 = vmatprep.mubr.f32.mxu0 0.0
  %v617 = vand.u32 %v139, 4294901760
  %618 = vmatmul.mubr.f32.gmra.mrb[0].mxu0 %v617
  %v619 = vpop.f32.mrb[0].mxu0
  %v620 = vadd.f32 %v367, %v619
  %v621 = vpop.f32.mrb[0].mxu0
  %622 = vmatprep.mubr.f32.mxu0 0.0
  %v623 = vand.u32 %v140, 4294901760
  %624 = vmatmul.mubr.f32.gmra.mrb[0].mxu0 %v623
  %v625 = vpop.f32.mrb[0].mxu0
  %v626 = vadd.f32 %v377, %v625
  %v627 = vpop.f32.mrb[0].mxu0
  %628 = vmatprep.mubr.f32.mxu0 0.0
  %v629 = vand.u32 %v141, 4294901760
  %630 = vmatmul.mubr.f32.gmra.mrb[0].mxu0 %v629
  %v631 = vpop.f32.mrb[0].mxu0
  %v632 = vadd.f32 %v387, %v631
  %v633 = vpop.f32.mrb[0].mxu0
  %634 = vmatprep.mubr.f32.mxu0 0.0
  %v635 = vand.u32 %v142, 4294901760
  %636 = vmatmul.mubr.f32.gmra.mrb[0].mxu0 %v635
  %v637 = vpop.f32.mrb[0].mxu0
  %v638 = vadd.f32 %v397, %v637
  %v639 = vpop.f32.mrb[0].mxu0
  %640 = vdwg.mxu0
  %641 = vmatprep.subr.mxu0 0.0
  %v642 = vand.u32 %v143, 4294901760
  %v643 = vsub.f32 %v143, %v642
  %644 = vmatpush1.msra.mxu0 %v643
  %645 = vmatprep.subr.mxu0 0.0
  %v646 = vand.u32 %v144, 4294901760
  %v647 = vsub.f32 %v144, %v646
  %648 = vmatpush1.msra.mxu0 %v647
  %649 = vmatprep.subr.mxu0 0.0
  %v650 = vand.u32 %v145, 4294901760
  %v651 = vsub.f32 %v145, %v650
  %652 = vmatpush1.msra.mxu0 %v651
  %653 = vmatprep.subr.mxu0 0.0
  %v654 = vand.u32 %v146, 4294901760
  %v655 = vsub.f32 %v146, %v654
  %656 = vmatpush1.msra.mxu0 %v655
  %657 = vmatprep.subr.mxu0 0.0
  %v658 = vand.u32 %v147, 4294901760
  %v659 = vsub.f32 %v147, %v658
  %660 = vmatpush1.msra.mxu0 %v659
  %661 = vmatprep.subr.mxu0 0.0
  %v662 = vand.u32 %v148, 4294901760
  %v663 = vsub.f32 %v148, %v662
  %664 = vmatpush1.msra.mxu0 %v663
  %665 = vmatprep.subr.mxu0 0.0
  %v666 = vand.u32 %v149, 4294901760
  %v667 = vsub.f32 %v149, %v666
  %668 = vmatpush1.msra.mxu0 %v667
  %669 = vmatprep.subr.mxu0 0.0
  %v670 = vand.u32 %v150, 4294901760
  %v671 = vsub.f32 %v150, %v670
  %672 = vmatpush1.msra.mxu0 %v671
  %673 = vmatprep.subr.mxu0 0.0
  %v674 = vand.u32 %v151, 4294901760
  %v675 = vsub.f32 %v151, %v674
  %676 = vmatpush1.msra.mxu0 %v675
  %677 = vmatprep.subr.mxu0 0.0
  %v678 = vand.u32 %v152, 4294901760
  %v679 = vsub.f32 %v152, %v678
  %680 = vmatpush1.msra.mxu0 %v679
  %681 = vmatprep.subr.mxu0 0.0
  %v682 = vand.u32 %v153, 4294901760
  %v683 = vsub.f32 %v153, %v682
  %684 = vmatpush1.msra.mxu0 %v683
  %685 = vmatprep.subr.mxu0 0.0
  %v686 = vand.u32 %v154, 4294901760
  %v687 = vsub.f32 %v154, %v686
  %688 = vmatpush1.msra.mxu0 %v687
  %689 = vmatprep.subr.mxu0 0.0
  %v690 = vand.u32 %v155, 4294901760
  %v691 = vsub.f32 %v155, %v690
  %692 = vmatpush1.msra.mxu0 %v691
  %693 = vmatprep.subr.mxu0 0.0
  %v694 = vand.u32 %v156, 4294901760
  %v695 = vsub.f32 %v156, %v694
  %696 = vmatpush1.msra.mxu0 %v695
  %697 = vmatprep.subr.mxu0 0.0
  %v698 = vand.u32 %v157, 4294901760
  %v699 = vsub.f32 %v157, %v698
  %700 = vmatpush1.msra.mxu0 %v699
  %701 = vmatprep.subr.mxu0 0.0
  %v702 = vand.u32 %v158, 4294901760
  %v703 = vsub.f32 %v158, %v702
  %704 = vmatpush1.msra.mxu0 %v703
  %705 = vmatprep.subr.mxu0 0.0
  %706 = vmatpush1.msra.mxu0 0.0
  %707 = vmatprep.subr.mxu0 0.0
  %708 = vmatpush1.msra.mxu0 0.0
  %709 = vmatprep.subr.mxu0 0.0
  %710 = vmatpush1.msra.mxu0 0.0
  %711 = vmatprep.subr.mxu0 0.0
  %712 = vmatpush1.msra.mxu0 0.0
  %713 = vmatprep.subr.mxu0 0.0
  %714 = vmatpush1.msra.mxu0 0.0
  %715 = vmatprep.subr.mxu0 0.0
  %716 = vmatpush1.msra.mxu0 0.0
  %717 = vmatprep.subr.mxu0 0.0
  %718 = vmatpush1.msra.mxu0 0.0
  %719 = vmatprep.subr.mxu0 0.0
  %720 = vmatpush1.msra.mxu0 0.0
  %721 = vmatprep.subr.mxu0 0.0
  %722 = vmatpush1.msra.mxu0 0.0
  %723 = vmatprep.subr.mxu0 0.0
  %724 = vmatpush1.msra.mxu0 0.0
  %725 = vmatprep.subr.mxu0 0.0
  %726 = vmatpush1.msra.mxu0 0.0
  %727 = vmatprep.subr.mxu0 0.0
  %728 = vmatpush1.msra.mxu0 0.0
  %729 = vmatprep.subr.mxu0 0.0
  %730 = vmatpush1.msra.mxu0 0.0
  %731 = vmatprep.subr.mxu0 0.0
  %732 = vmatpush1.msra.mxu0 0.0
  %733 = vmatprep.subr.mxu0 0.0
  %734 = vmatpush1.msra.mxu0 0.0
  %735 = vmatprep.subr.mxu0 0.0
  %736 = vmatpush1.msra.mxu0 0.0
  %737 = vmatprep.mubr.f32.mxu0 0.0
  %v738 = vand.u32 %v127, 4294901760
  %v739 = vsub.f32 %v127, %v738
  %740 = vmatmul.mubr.f32.gmra.mrb[0].mxu0 %v739
  %v741 = vpop.f32.mrb[0].mxu0
  %v742 = vadd.f32 %v548, %v741
  %v743 = vpop.f32.mrb[0].mxu0
  %744 = vmatprep.mubr.f32.mxu0 0.0
  %v745 = vand.u32 %v128, 4294901760
  %v746 = vsub.f32 %v128, %v745
  %747 = vmatmul.mubr.f32.gmra.mrb[0].mxu0 %v746
  %v748 = vpop.f32.mrb[0].mxu0
  %v749 = vadd.f32 %v554, %v748
  %v750 = vpop.f32.mrb[0].mxu0
  %751 = vmatprep.mubr.f32.mxu0 0.0
  %v752 = vand.u32 %v129, 4294901760
  %v753 = vsub.f32 %v129, %v752
  %754 = vmatmul.mubr.f32.gmra.mrb[0].mxu0 %v753
  %v755 = vpop.f32.mrb[0].mxu0
  %v756 = vadd.f32 %v560, %v755
  %v757 = vpop.f32.mrb[0].mxu0
  %758 = vmatprep.mubr.f32.mxu0 0.0
  %v759 = vand.u32 %v130, 4294901760
  %v760 = vsub.f32 %v130, %v759
  %761 = vmatmul.mubr.f32.gmra.mrb[0].mxu0 %v760
  %v762 = vpop.f32.mrb[0].mxu0
  %v763 = vadd.f32 %v566, %v762
  %v764 = vpop.f32.mrb[0].mxu0
  %765 = vmatprep.mubr.f32.mxu0 0.0
  %v766 = vand.u32 %v131, 4294901760
  %v767 = vsub.f32 %v131, %v766
  %768 = vmatmul.mubr.f32.gmra.mrb[0].mxu0 %v767
  %v769 = vpop.f32.mrb[0].mxu0
  %v770 = vadd.f32 %v572, %v769
  %v771 = vpop.f32.mrb[0].mxu0
  %772 = vmatprep.mubr.f32.mxu0 0.0
  %v773 = vand.u32 %v132, 4294901760
  %v774 = vsub.f32 %v132, %v773
  %775 = vmatmul.mubr.f32.gmra.mrb[0].mxu0 %v774
  %v776 = vpop.f32.mrb[0].mxu0
  %v777 = vadd.f32 %v578, %v776
  %v778 = vpop.f32.mrb[0].mxu0
  %779 = vmatprep.mubr.f32.mxu0 0.0
  %v780 = vand.u32 %v133, 4294901760
  %v781 = vsub.f32 %v133, %v780
  %782 = vmatmul.mubr.f32.gmra.mrb[0].mxu0 %v781
  %v783 = vpop.f32.mrb[0].mxu0
  %v784 = vadd.f32 %v584, %v783
  %v785 = vpop.f32.mrb[0].mxu0
  %786 = vmatprep.mubr.f32.mxu0 0.0
  %v787 = vand.u32 %v134, 4294901760
  %v788 = vsub.f32 %v134, %v787
  %789 = vmatmul.mubr.f32.gmra.mrb[0].mxu0 %v788
  %v790 = vpop.f32.mrb[0].mxu0
  %v791 = vadd.f32 %v590, %v790
  %v792 = vpop.f32.mrb[0].mxu0
  %793 = vmatprep.mubr.f32.mxu0 0.0
  %v794 = vand.u32 %v135, 4294901760
  %v795 = vsub.f32 %v135, %v794
  %796 = vmatmul.mubr.f32.gmra.mrb[0].mxu0 %v795
  %v797 = vpop.f32.mrb[0].mxu0
  %v798 = vadd.f32 %v596, %v797
  %v799 = vpop.f32.mrb[0].mxu0
  %800 = vmatprep.mubr.f32.mxu0 0.0
  %v801 = vand.u32 %v136, 4294901760
  %v802 = vsub.f32 %v136, %v801
  %803 = vmatmul.mubr.f32.gmra.mrb[0].mxu0 %v802
  %v804 = vpop.f32.mrb[0].mxu0
  %v805 = vadd.f32 %v602, %v804
  %v806 = vpop.f32.mrb[0].mxu0
  %807 = vmatprep.mubr.f32.mxu0 0.0
  %v808 = vand.u32 %v137, 4294901760
  %v809 = vsub.f32 %v137, %v808
  %810 = vmatmul.mubr.f32.gmra.mrb[0].mxu0 %v809
  %v811 = vpop.f32.mrb[0].mxu0
  %v812 = vadd.f32 %v608, %v811
  %v813 = vpop.f32.mrb[0].mxu0
  %814 = vmatprep.mubr.f32.mxu0 0.0
  %v815 = vand.u32 %v138, 4294901760
  %v816 = vsub.f32 %v138, %v815
  %817 = vmatmul.mubr.f32.gmra.mrb[0].mxu0 %v816
  %v818 = vpop.f32.mrb[0].mxu0
  %v819 = vadd.f32 %v614, %v818
  %v820 = vpop.f32.mrb[0].mxu0
  %821 = vmatprep.mubr.f32.mxu0 0.0
  %v822 = vand.u32 %v139, 4294901760
  %v823 = vsub.f32 %v139, %v822
  %824 = vmatmul.mubr.f32.gmra.mrb[0].mxu0 %v823
  %v825 = vpop.f32.mrb[0].mxu0
  %v826 = vadd.f32 %v620, %v825
  %v827 = vpop.f32.mrb[0].mxu0
  %828 = vmatprep.mubr.f32.mxu0 0.0
  %v829 = vand.u32 %v140, 4294901760
  %v830 = vsub.f32 %v140, %v829
  %831 = vmatmul.mubr.f32.gmra.mrb[0].mxu0 %v830
  %v832 = vpop.f32.mrb[0].mxu0
  %v833 = vadd.f32 %v626, %v832
  %v834 = vpop.f32.mrb[0].mxu0
  %835 = vmatprep.mubr.f32.mxu0 0.0
  %v836 = vand.u32 %v141, 4294901760
  %v837 = vsub.f32 %v141, %v836
  %838 = vmatmul.mubr.f32.gmra.mrb[0].mxu0 %v837
  %v839 = vpop.f32.mrb[0].mxu0
  %v840 = vadd.f32 %v632, %v839
  %v841 = vpop.f32.mrb[0].mxu0
  %842 = vmatprep.mubr.f32.mxu0 0.0
  %v843 = vand.u32 %v142, 4294901760
  %v844 = vsub.f32 %v142, %v843
  %845 = vmatmul.mubr.f32.gmra.mrb[0].mxu0 %v844
  %v846 = vpop.f32.mrb[0].mxu0
  %v847 = vadd.f32 %v638, %v846
  %v848 = vpop.f32.mrb[0].mxu0
  %849 = vdwg.mxu0
  %850 = vmatprep.subr.mxu0 0.0
  %v851 = vand.u32 %v143, 4294901760
  %852 = vmatpush1.msra.mxu0 %v851
  %853 = vmatprep.subr.mxu0 0.0
  %v854 = vand.u32 %v144, 4294901760
  %855 = vmatpush1.msra.mxu0 %v854
  %856 = vmatprep.subr.mxu0 0.0
  %v857 = vand.u32 %v145, 4294901760
  %858 = vmatpush1.msra.mxu0 %v857
  %859 = vmatprep.subr.mxu0 0.0
  %v860 = vand.u32 %v146, 4294901760
  %861 = vmatpush1.msra.mxu0 %v860
  %862 = vmatprep.subr.mxu0 0.0
  %v863 = vand.u32 %v147, 4294901760
  %864 = vmatpush1.msra.mxu0 %v863
  %865 = vmatprep.subr.mxu0 0.0
  %v866 = vand.u32 %v148, 4294901760
  %867 = vmatpush1.msra.mxu0 %v866
  %868 = vmatprep.subr.mxu0 0.0
  %v869 = vand.u32 %v149, 4294901760
  %870 = vmatpush1.msra.mxu0 %v869
  %871 = vmatprep.subr.mxu0 0.0
  %v872 = vand.u32 %v150, 4294901760
  %873 = vmatpush1.msra.mxu0 %v872
  %874 = vmatprep.subr.mxu0 0.0
  %v875 = vand.u32 %v151, 4294901760
  %876 = vmatpush1.msra.mxu0 %v875
  %877 = vmatprep.subr.mxu0 0.0
  %v878 = vand.u32 %v152, 4294901760
  %879 = vmatpush1.msra.mxu0 %v878
  %880 = vmatprep.subr.mxu0 0.0
  %v881 = vand.u32 %v153, 4294901760
  %882 = vmatpush1.msra.mxu0 %v881
  %883 = vmatprep.subr.mxu0 0.0
  %v884 = vand.u32 %v154, 4294901760
  %885 = vmatpush1.msra.mxu0 %v884
  %886 = vmatprep.subr.mxu0 0.0
  %v887 = vand.u32 %v155, 4294901760
  %888 = vmatpush1.msra.mxu0 %v887
  %889 = vmatprep.subr.mxu0 0.0
  %v890 = vand.u32 %v156, 4294901760
  %891 = vmatpush1.msra.mxu0 %v890
  %892 = vmatprep.subr.mxu0 0.0
  %v893 = vand.u32 %v157, 4294901760
  %894 = vmatpush1.msra.mxu0 %v893
  %895 = vmatprep.subr.mxu0 0.0
  %v896 = vand.u32 %v158, 4294901760
  %897 = vmatpush1.msra.mxu0 %v896
  %898 = vmatprep.subr.mxu0 0.0
  %899 = vmatpush1.msra.mxu0 0.0
  %900 = vmatprep.subr.mxu0 0.0
  %901 = vmatpush1.msra.mxu0 0.0
  %902 = vmatprep.subr.mxu0 0.0
  %903 = vmatpush1.msra.mxu0 0.0
  %904 = vmatprep.subr.mxu0 0.0
  %905 = vmatpush1.msra.mxu0 0.0
  %906 = vmatprep.subr.mxu0 0.0
  %907 = vmatpush1.msra.mxu0 0.0
  %908 = vmatprep.subr.mxu0 0.0
  %909 = vmatpush1.msra.mxu0 0.0
  %910 = vmatprep.subr.mxu0 0.0
  %911 = vmatpush1.msra.mxu0 0.0
  %912 = vmatprep.subr.mxu0 0.0
  %913 = vmatpush1.msra.mxu0 0.0
  %914 = vmatprep.subr.mxu0 0.0
  %915 = vmatpush1.msra.mxu0 0.0
  %916 = vmatprep.subr.mxu0 0.0
  %917 = vmatpush1.msra.mxu0 0.0
  %918 = vmatprep.subr.mxu0 0.0
  %919 = vmatpush1.msra.mxu0 0.0
  %920 = vmatprep.subr.mxu0 0.0
  %921 = vmatpush1.msra.mxu0 0.0
  %922 = vmatprep.subr.mxu0 0.0
  %923 = vmatpush1.msra.mxu0 0.0
  %924 = vmatprep.subr.mxu0 0.0
  %925 = vmatpush1.msra.mxu0 0.0
  %926 = vmatprep.subr.mxu0 0.0
  %927 = vmatpush1.msra.mxu0 0.0
  %928 = vmatprep.subr.mxu0 0.0
  %929 = vmatpush1.msra.mxu0 0.0
  %930 = vmatprep.mubr.f32.mxu0 0.0
  %v931 = vand.u32 %v127, 4294901760
  %v932 = vsub.f32 %v127, %v931
  %v933 = vand.u32 %v932, 4294901760
  %934 = vmatmul.mubr.f32.gmra.mrb[0].mxu0 %v933
  %v935 = vpop.f32.mrb[0].mxu0
  %v936 = vadd.f32 %v742, %v935
  %v937 = vpop.f32.mrb[0].mxu0
  %938 = vmatprep.mubr.f32.mxu0 0.0
  %v939 = vand.u32 %v128, 4294901760
  %v940 = vsub.f32 %v128, %v939
  %v941 = vand.u32 %v940, 4294901760
  %942 = vmatmul.mubr.f32.gmra.mrb[0].mxu0 %v941
  %v943 = vpop.f32.mrb[0].mxu0
  %v944 = vadd.f32 %v749, %v943
  %v945 = vpop.f32.mrb[0].mxu0
  %946 = vmatprep.mubr.f32.mxu0 0.0
  %v947 = vand.u32 %v129, 4294901760
  %v948 = vsub.f32 %v129, %v947
  %v949 = vand.u32 %v948, 4294901760
  %950 = vmatmul.mubr.f32.gmra.mrb[0].mxu0 %v949
  %v951 = vpop.f32.mrb[0].mxu0
  %v952 = vadd.f32 %v756, %v951
  %v953 = vpop.f32.mrb[0].mxu0
  %954 = vmatprep.mubr.f32.mxu0 0.0
  %v955 = vand.u32 %v130, 4294901760
  %v956 = vsub.f32 %v130, %v955
  %v957 = vand.u32 %v956, 4294901760
  %958 = vmatmul.mubr.f32.gmra.mrb[0].mxu0 %v957
  %v959 = vpop.f32.mrb[0].mxu0
  %v960 = vadd.f32 %v763, %v959
  %v961 = vpop.f32.mrb[0].mxu0
  %962 = vmatprep.mubr.f32.mxu0 0.0
  %v963 = vand.u32 %v131, 4294901760
  %v964 = vsub.f32 %v131, %v963
  %v965 = vand.u32 %v964, 4294901760
  %966 = vmatmul.mubr.f32.gmra.mrb[0].mxu0 %v965
  %v967 = vpop.f32.mrb[0].mxu0
  %v968 = vadd.f32 %v770, %v967
  %v969 = vpop.f32.mrb[0].mxu0
  %970 = vmatprep.mubr.f32.mxu0 0.0
  %v971 = vand.u32 %v132, 4294901760
  %v972 = vsub.f32 %v132, %v971
  %v973 = vand.u32 %v972, 4294901760
  %974 = vmatmul.mubr.f32.gmra.mrb[0].mxu0 %v973
  %v975 = vpop.f32.mrb[0].mxu0
  %v976 = vadd.f32 %v777, %v975
  %v977 = vpop.f32.mrb[0].mxu0
  %978 = vmatprep.mubr.f32.mxu0 0.0
  %v979 = vand.u32 %v133, 4294901760
  %v980 = vsub.f32 %v133, %v979
  %v981 = vand.u32 %v980, 4294901760
  %982 = vmatmul.mubr.f32.gmra.mrb[0].mxu0 %v981
  %v983 = vpop.f32.mrb[0].mxu0
  %v984 = vadd.f32 %v784, %v983
  %v985 = vpop.f32.mrb[0].mxu0
  %986 = vmatprep.mubr.f32.mxu0 0.0
  %v987 = vand.u32 %v134, 4294901760
  %v988 = vsub.f32 %v134, %v987
  %v989 = vand.u32 %v988, 4294901760
  %990 = vmatmul.mubr.f32.gmra.mrb[0].mxu0 %v989
  %v991 = vpop.f32.mrb[0].mxu0
  %v992 = vadd.f32 %v791, %v991
  %v993 = vpop.f32.mrb[0].mxu0
  %994 = vmatprep.mubr.f32.mxu0 0.0
  %v995 = vand.u32 %v135, 4294901760
  %v996 = vsub.f32 %v135, %v995
  %v997 = vand.u32 %v996, 4294901760
  %998 = vmatmul.mubr.f32.gmra.mrb[0].mxu0 %v997
  %v999 = vpop.f32.mrb[0].mxu0
  %v1000 = vadd.f32 %v798, %v999
  %v1001 = vpop.f32.mrb[0].mxu0
  %1002 = vmatprep.mubr.f32.mxu0 0.0
  %v1003 = vand.u32 %v136, 4294901760
  %v1004 = vsub.f32 %v136, %v1003
  %v1005 = vand.u32 %v1004, 4294901760
  %1006 = vmatmul.mubr.f32.gmra.mrb[0].mxu0 %v1005
  %v1007 = vpop.f32.mrb[0].mxu0
  %v1008 = vadd.f32 %v805, %v1007
  %v1009 = vpop.f32.mrb[0].mxu0
  %1010 = vmatprep.mubr.f32.mxu0 0.0
  %v1011 = vand.u32 %v137, 4294901760
  %v1012 = vsub.f32 %v137, %v1011
  %v1013 = vand.u32 %v1012, 4294901760
  %1014 = vmatmul.mubr.f32.gmra.mrb[0].mxu0 %v1013
  %v1015 = vpop.f32.mrb[0].mxu0
  %v1016 = vadd.f32 %v812, %v1015
  %v1017 = vpop.f32.mrb[0].mxu0
  %1018 = vmatprep.mubr.f32.mxu0 0.0
  %v1019 = vand.u32 %v138, 4294901760
  %v1020 = vsub.f32 %v138, %v1019
  %v1021 = vand.u32 %v1020, 4294901760
  %1022 = vmatmul.mubr.f32.gmra.mrb[0].mxu0 %v1021
  %v1023 = vpop.f32.mrb[0].mxu0
  %v1024 = vadd.f32 %v819, %v1023
  %v1025 = vpop.f32.mrb[0].mxu0
  %1026 = vmatprep.mubr.f32.mxu0 0.0
  %v1027 = vand.u32 %v139, 4294901760
  %v1028 = vsub.f32 %v139, %v1027
  %v1029 = vand.u32 %v1028, 4294901760
  %1030 = vmatmul.mubr.f32.gmra.mrb[0].mxu0 %v1029
  %v1031 = vpop.f32.mrb[0].mxu0
  %v1032 = vadd.f32 %v826, %v1031
  %v1033 = vpop.f32.mrb[0].mxu0
  %1034 = vmatprep.mubr.f32.mxu0 0.0
  %v1035 = vand.u32 %v140, 4294901760
  %v1036 = vsub.f32 %v140, %v1035
  %v1037 = vand.u32 %v1036, 4294901760
  %1038 = vmatmul.mubr.f32.gmra.mrb[0].mxu0 %v1037
  %v1039 = vpop.f32.mrb[0].mxu0
  %v1040 = vadd.f32 %v833, %v1039
  %v1041 = vpop.f32.mrb[0].mxu0
  %1042 = vmatprep.mubr.f32.mxu0 0.0
  %v1043 = vand.u32 %v141, 4294901760
  %v1044 = vsub.f32 %v141, %v1043
  %v1045 = vand.u32 %v1044, 4294901760
  %1046 = vmatmul.mubr.f32.gmra.mrb[0].mxu0 %v1045
  %v1047 = vpop.f32.mrb[0].mxu0
  %v1048 = vadd.f32 %v840, %v1047
  %v1049 = vpop.f32.mrb[0].mxu0
  %1050 = vmatprep.mubr.f32.mxu0 0.0
  %v1051 = vand.u32 %v142, 4294901760
  %v1052 = vsub.f32 %v142, %v1051
  %v1053 = vand.u32 %v1052, 4294901760
  %1054 = vmatmul.mubr.f32.gmra.mrb[0].mxu0 %v1053
  %v1055 = vpop.f32.mrb[0].mxu0
  %v1056 = vadd.f32 %v847, %v1055
  %v1057 = vpop.f32.mrb[0].mxu0
  %1058 = vdwg.mxu0
  %1059 = vmatprep.subr.mxu0 0.0
  %v1060 = vand.u32 %v143, 4294901760
  %v1061 = vsub.f32 %v143, %v1060
  %v1062 = vand.u32 %v1061, 4294901760
  %1063 = vmatpush1.msra.mxu0 %v1062
  %1064 = vmatprep.subr.mxu0 0.0
  %v1065 = vand.u32 %v144, 4294901760
  %v1066 = vsub.f32 %v144, %v1065
  %v1067 = vand.u32 %v1066, 4294901760
  %1068 = vmatpush1.msra.mxu0 %v1067
  %1069 = vmatprep.subr.mxu0 0.0
  %v1070 = vand.u32 %v145, 4294901760
  %v1071 = vsub.f32 %v145, %v1070
  %v1072 = vand.u32 %v1071, 4294901760
  %1073 = vmatpush1.msra.mxu0 %v1072
  %1074 = vmatprep.subr.mxu0 0.0
  %v1075 = vand.u32 %v146, 4294901760
  %v1076 = vsub.f32 %v146, %v1075
  %v1077 = vand.u32 %v1076, 4294901760
  %1078 = vmatpush1.msra.mxu0 %v1077
  %1079 = vmatprep.subr.mxu0 0.0
  %v1080 = vand.u32 %v147, 4294901760
  %v1081 = vsub.f32 %v147, %v1080
  %v1082 = vand.u32 %v1081, 4294901760
  %1083 = vmatpush1.msra.mxu0 %v1082
  %1084 = vmatprep.subr.mxu0 0.0
  %v1085 = vand.u32 %v148, 4294901760
  %v1086 = vsub.f32 %v148, %v1085
  %v1087 = vand.u32 %v1086, 4294901760
  %1088 = vmatpush1.msra.mxu0 %v1087
  %1089 = vmatprep.subr.mxu0 0.0
  %v1090 = vand.u32 %v149, 4294901760
  %v1091 = vsub.f32 %v149, %v1090
  %v1092 = vand.u32 %v1091, 4294901760
  %1093 = vmatpush1.msra.mxu0 %v1092
  %1094 = vmatprep.subr.mxu0 0.0
  %v1095 = vand.u32 %v150, 4294901760
  %v1096 = vsub.f32 %v150, %v1095
  %v1097 = vand.u32 %v1096, 4294901760
  %1098 = vmatpush1.msra.mxu0 %v1097
  %1099 = vmatprep.subr.mxu0 0.0
  %v1100 = vand.u32 %v151, 4294901760
  %v1101 = vsub.f32 %v151, %v1100
  %v1102 = vand.u32 %v1101, 4294901760
  %1103 = vmatpush1.msra.mxu0 %v1102
  %1104 = vmatprep.subr.mxu0 0.0
  %v1105 = vand.u32 %v152, 4294901760
  %v1106 = vsub.f32 %v152, %v1105
  %v1107 = vand.u32 %v1106, 4294901760
  %1108 = vmatpush1.msra.mxu0 %v1107
  %1109 = vmatprep.subr.mxu0 0.0
  %v1110 = vand.u32 %v153, 4294901760
  %v1111 = vsub.f32 %v153, %v1110
  %v1112 = vand.u32 %v1111, 4294901760
  %1113 = vmatpush1.msra.mxu0 %v1112
  %1114 = vmatprep.subr.mxu0 0.0
  %v1115 = vand.u32 %v154, 4294901760
  %v1116 = vsub.f32 %v154, %v1115
  %v1117 = vand.u32 %v1116, 4294901760
  %1118 = vmatpush1.msra.mxu0 %v1117
  %1119 = vmatprep.subr.mxu0 0.0
  %v1120 = vand.u32 %v155, 4294901760
  %v1121 = vsub.f32 %v155, %v1120
  %v1122 = vand.u32 %v1121, 4294901760
  %1123 = vmatpush1.msra.mxu0 %v1122
  %1124 = vmatprep.subr.mxu0 0.0
  %v1125 = vand.u32 %v156, 4294901760
  %v1126 = vsub.f32 %v156, %v1125
  %v1127 = vand.u32 %v1126, 4294901760
  %1128 = vmatpush1.msra.mxu0 %v1127
  %1129 = vmatprep.subr.mxu0 0.0
  %v1130 = vand.u32 %v157, 4294901760
  %v1131 = vsub.f32 %v157, %v1130
  %v1132 = vand.u32 %v1131, 4294901760
  %1133 = vmatpush1.msra.mxu0 %v1132
  %1134 = vmatprep.subr.mxu0 0.0
  %v1135 = vand.u32 %v158, 4294901760
  %v1136 = vsub.f32 %v158, %v1135
  %v1137 = vand.u32 %v1136, 4294901760
  %1138 = vmatpush1.msra.mxu0 %v1137
  %1139 = vmatprep.subr.mxu0 0.0
  %1140 = vmatpush1.msra.mxu0 0.0
  %1141 = vmatprep.subr.mxu0 0.0
  %1142 = vmatpush1.msra.mxu0 0.0
  %1143 = vmatprep.subr.mxu0 0.0
  %1144 = vmatpush1.msra.mxu0 0.0
  %1145 = vmatprep.subr.mxu0 0.0
  %1146 = vmatpush1.msra.mxu0 0.0
  %1147 = vmatprep.subr.mxu0 0.0
  %1148 = vmatpush1.msra.mxu0 0.0
  %1149 = vmatprep.subr.mxu0 0.0
  %1150 = vmatpush1.msra.mxu0 0.0
  %1151 = vmatprep.subr.mxu0 0.0
  %1152 = vmatpush1.msra.mxu0 0.0
  %1153 = vmatprep.subr.mxu0 0.0
  %1154 = vmatpush1.msra.mxu0 0.0
  %1155 = vmatprep.subr.mxu0 0.0
  %1156 = vmatpush1.msra.mxu0 0.0
  %1157 = vmatprep.subr.mxu0 0.0
  %1158 = vmatpush1.msra.mxu0 0.0
  %1159 = vmatprep.subr.mxu0 0.0
  %1160 = vmatpush1.msra.mxu0 0.0
  %1161 = vmatprep.subr.mxu0 0.0
  %1162 = vmatpush1.msra.mxu0 0.0
  %1163 = vmatprep.subr.mxu0 0.0
  %1164 = vmatpush1.msra.mxu0 0.0
  %1165 = vmatprep.subr.mxu0 0.0
  %1166 = vmatpush1.msra.mxu0 0.0
  %1167 = vmatprep.subr.mxu0 0.0
  %1168 = vmatpush1.msra.mxu0 0.0
  %1169 = vmatprep.subr.mxu0 0.0
  %1170 = vmatpush1.msra.mxu0 0.0
  %1171 = vmatprep.mubr.f32.mxu0 0.0
  %v1172 = vand.u32 %v127, 4294901760
  %1173 = vmatmul.mubr.f32.gmra.mrb[0].mxu0 %v1172
  %v1174 = vpop.f32.mrb[0].mxu0
  %v1175 = vadd.f32 %v936, %v1174
  %v1176 = vpop.f32.mrb[0].mxu0
  %1177 = vmatprep.mubr.f32.mxu0 0.0
  %v1178 = vand.u32 %v128, 4294901760
  %1179 = vmatmul.mubr.f32.gmra.mrb[0].mxu0 %v1178
  %v1180 = vpop.f32.mrb[0].mxu0
  %v1181 = vadd.f32 %v944, %v1180
  %v1182 = vpop.f32.mrb[0].mxu0
  %1183 = vmatprep.mubr.f32.mxu0 0.0
  %v1184 = vand.u32 %v129, 4294901760
  %1185 = vmatmul.mubr.f32.gmra.mrb[0].mxu0 %v1184
  %v1186 = vpop.f32.mrb[0].mxu0
  %v1187 = vadd.f32 %v952, %v1186
  %v1188 = vpop.f32.mrb[0].mxu0
  %1189 = vmatprep.mubr.f32.mxu0 0.0
  %v1190 = vand.u32 %v130, 4294901760
  %1191 = vmatmul.mubr.f32.gmra.mrb[0].mxu0 %v1190
  %v1192 = vpop.f32.mrb[0].mxu0
  %v1193 = vadd.f32 %v960, %v1192
  %v1194 = vpop.f32.mrb[0].mxu0
  %1195 = vmatprep.mubr.f32.mxu0 0.0
  %v1196 = vand.u32 %v131, 4294901760
  %1197 = vmatmul.mubr.f32.gmra.mrb[0].mxu0 %v1196
  %v1198 = vpop.f32.mrb[0].mxu0
  %v1199 = vadd.f32 %v968, %v1198
  %v1200 = vpop.f32.mrb[0].mxu0
  %1201 = vmatprep.mubr.f32.mxu0 0.0
  %v1202 = vand.u32 %v132, 4294901760
  %1203 = vmatmul.mubr.f32.gmra.mrb[0].mxu0 %v1202
  %v1204 = vpop.f32.mrb[0].mxu0
  %v1205 = vadd.f32 %v976, %v1204
  %v1206 = vpop.f32.mrb[0].mxu0
  %1207 = vmatprep.mubr.f32.mxu0 0.0
  %v1208 = vand.u32 %v133, 4294901760
  %1209 = vmatmul.mubr.f32.gmra.mrb[0].mxu0 %v1208
  %v1210 = vpop.f32.mrb[0].mxu0
  %v1211 = vadd.f32 %v984, %v1210
  %v1212 = vpop.f32.mrb[0].mxu0
  %1213 = vmatprep.mubr.f32.mxu0 0.0
  %v1214 = vand.u32 %v134, 4294901760
  %1215 = vmatmul.mubr.f32.gmra.mrb[0].mxu0 %v1214
  %v1216 = vpop.f32.mrb[0].mxu0
  %v1217 = vadd.f32 %v992, %v1216
  %v1218 = vpop.f32.mrb[0].mxu0
  %1219 = vmatprep.mubr.f32.mxu0 0.0
  %v1220 = vand.u32 %v135, 4294901760
  %1221 = vmatmul.mubr.f32.gmra.mrb[0].mxu0 %v1220
  %v1222 = vpop.f32.mrb[0].mxu0
  %v1223 = vadd.f32 %v1000, %v1222
  %v1224 = vpop.f32.mrb[0].mxu0
  %1225 = vmatprep.mubr.f32.mxu0 0.0
  %v1226 = vand.u32 %v136, 4294901760
  %1227 = vmatmul.mubr.f32.gmra.mrb[0].mxu0 %v1226
  %v1228 = vpop.f32.mrb[0].mxu0
  %v1229 = vadd.f32 %v1008, %v1228
  %v1230 = vpop.f32.mrb[0].mxu0
  %1231 = vmatprep.mubr.f32.mxu0 0.0
  %v1232 = vand.u32 %v137, 4294901760
  %1233 = vmatmul.mubr.f32.gmra.mrb[0].mxu0 %v1232
  %v1234 = vpop.f32.mrb[0].mxu0
  %v1235 = vadd.f32 %v1016, %v1234
  %v1236 = vpop.f32.mrb[0].mxu0
  %1237 = vmatprep.mubr.f32.mxu0 0.0
  %v1238 = vand.u32 %v138, 4294901760
  %1239 = vmatmul.mubr.f32.gmra.mrb[0].mxu0 %v1238
  %v1240 = vpop.f32.mrb[0].mxu0
  %v1241 = vadd.f32 %v1024, %v1240
  %v1242 = vpop.f32.mrb[0].mxu0
  %1243 = vmatprep.mubr.f32.mxu0 0.0
  %v1244 = vand.u32 %v139, 4294901760
  %1245 = vmatmul.mubr.f32.gmra.mrb[0].mxu0 %v1244
  %v1246 = vpop.f32.mrb[0].mxu0
  %v1247 = vadd.f32 %v1032, %v1246
  %v1248 = vpop.f32.mrb[0].mxu0
  %1249 = vmatprep.mubr.f32.mxu0 0.0
  %v1250 = vand.u32 %v140, 4294901760
  %1251 = vmatmul.mubr.f32.gmra.mrb[0].mxu0 %v1250
  %v1252 = vpop.f32.mrb[0].mxu0
  %v1253 = vadd.f32 %v1040, %v1252
  %v1254 = vpop.f32.mrb[0].mxu0
  %1255 = vmatprep.mubr.f32.mxu0 0.0
  %v1256 = vand.u32 %v141, 4294901760
  %1257 = vmatmul.mubr.f32.gmra.mrb[0].mxu0 %v1256
  %v1258 = vpop.f32.mrb[0].mxu0
  %v1259 = vadd.f32 %v1048, %v1258
  %v1260 = vpop.f32.mrb[0].mxu0
  %1261 = vmatprep.mubr.f32.mxu0 0.0
  %v1262 = vand.u32 %v142, 4294901760
  %1263 = vmatmul.mubr.f32.gmra.mrb[0].mxu0 %v1262
  %v1264 = vpop.f32.mrb[0].mxu0
  %v1265 = vadd.f32 %v1056, %v1264
  %v1266 = vpop.f32.mrb[0].mxu0
  %1267 = vdwg.mxu0
  %1268 = vmatprep.subr.mxu0 0.0
  %v1269 = vand.u32 %v143, 4294901760
  %1270 = vmatpush1.msra.mxu0 %v1269
  %1271 = vmatprep.subr.mxu0 0.0
  %v1272 = vand.u32 %v144, 4294901760
  %1273 = vmatpush1.msra.mxu0 %v1272
  %1274 = vmatprep.subr.mxu0 0.0
  %v1275 = vand.u32 %v145, 4294901760
  %1276 = vmatpush1.msra.mxu0 %v1275
  %1277 = vmatprep.subr.mxu0 0.0
  %v1278 = vand.u32 %v146, 4294901760
  %1279 = vmatpush1.msra.mxu0 %v1278
  %1280 = vmatprep.subr.mxu0 0.0
  %v1281 = vand.u32 %v147, 4294901760
  %1282 = vmatpush1.msra.mxu0 %v1281
  %1283 = vmatprep.subr.mxu0 0.0
  %v1284 = vand.u32 %v148, 4294901760
  %1285 = vmatpush1.msra.mxu0 %v1284
  %1286 = vmatprep.subr.mxu0 0.0
  %v1287 = vand.u32 %v149, 4294901760
  %1288 = vmatpush1.msra.mxu0 %v1287
  %1289 = vmatprep.subr.mxu0 0.0
  %v1290 = vand.u32 %v150, 4294901760
  %1291 = vmatpush1.msra.mxu0 %v1290
  %1292 = vmatprep.subr.mxu0 0.0
  %v1293 = vand.u32 %v151, 4294901760
  %1294 = vmatpush1.msra.mxu0 %v1293
  %1295 = vmatprep.subr.mxu0 0.0
  %v1296 = vand.u32 %v152, 4294901760
  %1297 = vmatpush1.msra.mxu0 %v1296
  %1298 = vmatprep.subr.mxu0 0.0
  %v1299 = vand.u32 %v153, 4294901760
  %1300 = vmatpush1.msra.mxu0 %v1299
  %1301 = vmatprep.subr.mxu0 0.0
  %v1302 = vand.u32 %v154, 4294901760
  %1303 = vmatpush1.msra.mxu0 %v1302
  %1304 = vmatprep.subr.mxu0 0.0
  %v1305 = vand.u32 %v155, 4294901760
  %1306 = vmatpush1.msra.mxu0 %v1305
  %1307 = vmatprep.subr.mxu0 0.0
  %v1308 = vand.u32 %v156, 4294901760
  %1309 = vmatpush1.msra.mxu0 %v1308
  %1310 = vmatprep.subr.mxu0 0.0
  %v1311 = vand.u32 %v157, 4294901760
  %1312 = vmatpush1.msra.mxu0 %v1311
  %1313 = vmatprep.subr.mxu0 0.0
  %v1314 = vand.u32 %v158, 4294901760
  %1315 = vmatpush1.msra.mxu0 %v1314
  %1316 = vmatprep.subr.mxu0 0.0
  %1317 = vmatpush1.msra.mxu0 0.0
  %1318 = vmatprep.subr.mxu0 0.0
  %1319 = vmatpush1.msra.mxu0 0.0
  %1320 = vmatprep.subr.mxu0 0.0
  %1321 = vmatpush1.msra.mxu0 0.0
  %1322 = vmatprep.subr.mxu0 0.0
  %1323 = vmatpush1.msra.mxu0 0.0
  %1324 = vmatprep.subr.mxu0 0.0
  %1325 = vmatpush1.msra.mxu0 0.0
  %1326 = vmatprep.subr.mxu0 0.0
  %1327 = vmatpush1.msra.mxu0 0.0
  %1328 = vmatprep.subr.mxu0 0.0
  %1329 = vmatpush1.msra.mxu0 0.0
  %1330 = vmatprep.subr.mxu0 0.0
  %1331 = vmatpush1.msra.mxu0 0.0
  %1332 = vmatprep.subr.mxu0 0.0
  %1333 = vmatpush1.msra.mxu0 0.0
  %1334 = vmatprep.subr.mxu0 0.0
  %1335 = vmatpush1.msra.mxu0 0.0
  %1336 = vmatprep.subr.mxu0 0.0
  %1337 = vmatpush1.msra.mxu0 0.0
  %1338 = vmatprep.subr.mxu0 0.0
  %1339 = vmatpush1.msra.mxu0 0.0
  %1340 = vmatprep.subr.mxu0 0.0
  %1341 = vmatpush1.msra.mxu0 0.0
  %1342 = vmatprep.subr.mxu0 0.0
  %1343 = vmatpush1.msra.mxu0 0.0
  %1344 = vmatprep.subr.mxu0 0.0
  %1345 = vmatpush1.msra.mxu0 0.0
  %1346 = vmatprep.subr.mxu0 0.0
  %1347 = vmatpush1.msra.mxu0 0.0
  %1348 = vmatprep.mubr.f32.mxu0 0.0
  %v1349 = vand.u32 %v127, 4294901760
  %1350 = vmatmul.mubr.f32.gmra.mrb[0].mxu0 %v1349
  %v1351 = vpop.f32.mrb[0].mxu0
  %v1352 = vadd.f32 %v1175, %v1351
  %v1353 = vpop.f32.mrb[0].mxu0
  %1354 = vmatprep.mubr.f32.mxu0 0.0
  %v1355 = vand.u32 %v128, 4294901760
  %1356 = vmatmul.mubr.f32.gmra.mrb[0].mxu0 %v1355
  %v1357 = vpop.f32.mrb[0].mxu0
  %v1358 = vadd.f32 %v1181, %v1357
  %v1359 = vpop.f32.mrb[0].mxu0
  %1360 = vmatprep.mubr.f32.mxu0 0.0
  %v1361 = vand.u32 %v129, 4294901760
  %1362 = vmatmul.mubr.f32.gmra.mrb[0].mxu0 %v1361
  %v1363 = vpop.f32.mrb[0].mxu0
  %v1364 = vadd.f32 %v1187, %v1363
  %v1365 = vpop.f32.mrb[0].mxu0
  %1366 = vmatprep.mubr.f32.mxu0 0.0
  %v1367 = vand.u32 %v130, 4294901760
  %1368 = vmatmul.mubr.f32.gmra.mrb[0].mxu0 %v1367
  %v1369 = vpop.f32.mrb[0].mxu0
  %v1370 = vadd.f32 %v1193, %v1369
  %v1371 = vpop.f32.mrb[0].mxu0
  %1372 = vmatprep.mubr.f32.mxu0 0.0
  %v1373 = vand.u32 %v131, 4294901760
  %1374 = vmatmul.mubr.f32.gmra.mrb[0].mxu0 %v1373
  %v1375 = vpop.f32.mrb[0].mxu0
  %v1376 = vadd.f32 %v1199, %v1375
  %v1377 = vpop.f32.mrb[0].mxu0
  %1378 = vmatprep.mubr.f32.mxu0 0.0
  %v1379 = vand.u32 %v132, 4294901760
  %1380 = vmatmul.mubr.f32.gmra.mrb[0].mxu0 %v1379
  %v1381 = vpop.f32.mrb[0].mxu0
  %v1382 = vadd.f32 %v1205, %v1381
  %v1383 = vpop.f32.mrb[0].mxu0
  %1384 = vmatprep.mubr.f32.mxu0 0.0
  %v1385 = vand.u32 %v133, 4294901760
  %1386 = vmatmul.mubr.f32.gmra.mrb[0].mxu0 %v1385
  %v1387 = vpop.f32.mrb[0].mxu0
  %v1388 = vadd.f32 %v1211, %v1387
  %v1389 = vpop.f32.mrb[0].mxu0
  %1390 = vmatprep.mubr.f32.mxu0 0.0
  %v1391 = vand.u32 %v134, 4294901760
  %1392 = vmatmul.mubr.f32.gmra.mrb[0].mxu0 %v1391
  %v1393 = vpop.f32.mrb[0].mxu0
  %v1394 = vadd.f32 %v1217, %v1393
  %v1395 = vpop.f32.mrb[0].mxu0
  %1396 = vmatprep.mubr.f32.mxu0 0.0
  %v1397 = vand.u32 %v135, 4294901760
  %1398 = vmatmul.mubr.f32.gmra.mrb[0].mxu0 %v1397
  %v1399 = vpop.f32.mrb[0].mxu0
  %v1400 = vadd.f32 %v1223, %v1399
  %v1401 = vpop.f32.mrb[0].mxu0
  %1402 = vmatprep.mubr.f32.mxu0 0.0
  %v1403 = vand.u32 %v136, 4294901760
  %1404 = vmatmul.mubr.f32.gmra.mrb[0].mxu0 %v1403
  %v1405 = vpop.f32.mrb[0].mxu0
  %v1406 = vadd.f32 %v1229, %v1405
  %v1407 = vpop.f32.mrb[0].mxu0
  %1408 = vmatprep.mubr.f32.mxu0 0.0
  %v1409 = vand.u32 %v137, 4294901760
  %1410 = vmatmul.mubr.f32.gmra.mrb[0].mxu0 %v1409
  %v1411 = vpop.f32.mrb[0].mxu0
  %v1412 = vadd.f32 %v1235, %v1411
  %v1413 = vpop.f32.mrb[0].mxu0
  %1414 = vmatprep.mubr.f32.mxu0 0.0
  %v1415 = vand.u32 %v138, 4294901760
  %1416 = vmatmul.mubr.f32.gmra.mrb[0].mxu0 %v1415
  %v1417 = vpop.f32.mrb[0].mxu0
  %v1418 = vadd.f32 %v1241, %v1417
  %v1419 = vpop.f32.mrb[0].mxu0
  %1420 = vmatprep.mubr.f32.mxu0 0.0
  %v1421 = vand.u32 %v139, 4294901760
  %1422 = vmatmul.mubr.f32.gmra.mrb[0].mxu0 %v1421
  %v1423 = vpop.f32.mrb[0].mxu0
  %v1424 = vadd.f32 %v1247, %v1423
  %v1425 = vpop.f32.mrb[0].mxu0
  %1426 = vmatprep.mubr.f32.mxu0 0.0
  %v1427 = vand.u32 %v140, 4294901760
  %1428 = vmatmul.mubr.f32.gmra.mrb[0].mxu0 %v1427
  %v1429 = vpop.f32.mrb[0].mxu0
  %v1430 = vadd.f32 %v1253, %v1429
  %v1431 = vpop.f32.mrb[0].mxu0
  %1432 = vmatprep.mubr.f32.mxu0 0.0
  %v1433 = vand.u32 %v141, 4294901760
  %1434 = vmatmul.mubr.f32.gmra.mrb[0].mxu0 %v1433
  %v1435 = vpop.f32.mrb[0].mxu0
  %v1436 = vadd.f32 %v1259, %v1435
  %v1437 = vpop.f32.mrb[0].mxu0
  %1438 = vmatprep.mubr.f32.mxu0 0.0
  %v1439 = vand.u32 %v142, 4294901760
  %1440 = vmatmul.mubr.f32.gmra.mrb[0].mxu0 %v1439
  %v1441 = vpop.f32.mrb[0].mxu0
  %v1442 = vadd.f32 %v1265, %v1441
  %v1443 = vpop.f32.mrb[0].mxu0
  %1444 = vdwg.mxu0
  %p1445 = scmp.eq.s32.totalorder 0, 0
  // Predicated region
  $region10: #{_poincare_lookup_padded.1} parent=0 // pred_check
    %p1446 = pneg %p1445
  $region11: #{_poincare_lookup_padded.1} parent=0 // pred_check_branch
    %1448 = sbr.rel (%p1446) target = $region13
  $region12: #{_poincare_lookup_padded.1} parent=0 // pred_region
    %vm1449 = vcmask 130048
    %1450 = vst.msk [vmem:[%s2] sm:$0xff] %vm1449, 0.0
    %1451 = vst.msk [vmem:[%s2 + $0x8] sm:$0xff] %vm1449, 0.0
    %1452 = vst.msk [vmem:[%s2 + $0x10] sm:$0xff] %vm1449, 0.0
    %1453 = vst.msk [vmem:[%s2 + $0x18] sm:$0xff] %vm1449, 0.0
    %1454 = vst.msk [vmem:[%s2 + $0x20] sm:$0xff] %vm1449, 0.0
    %1455 = vst.msk [vmem:[%s2 + $0x28] sm:$0xff] %vm1449, 0.0
    %1456 = vst.msk [vmem:[%s2 + $0x30] sm:$0xff] %vm1449, 0.0
    %1457 = vst.msk [vmem:[%s2 + $0x38] sm:$0xff] %vm1449, 0.0
    %1458 = vst.msk [vmem:[%s2 + $0x40] sm:$0xff] %vm1449, 0.0
    %1459 = vst.msk [vmem:[%s2 + $0x48] sm:$0xff] %vm1449, 0.0
    %1460 = vst.msk [vmem:[%s2 + $0x50] sm:$0xff] %vm1449, 0.0
    %1461 = vst.msk [vmem:[%s2 + $0x58] sm:$0xff] %vm1449, 0.0
    %1462 = vst.msk [vmem:[%s2 + $0x60] sm:$0xff] %vm1449, 0.0
    %1463 = vst.msk [vmem:[%s2 + $0x68] sm:$0xff] %vm1449, 0.0
    %1464 = vst.msk [vmem:[%s2 + $0x70] sm:$0xff] %vm1449, 0.0
    %1465 = vst.msk [vmem:[%s2 + $0x78] sm:$0xff] %vm1449, 0.0
  $region13: #{_poincare_lookup_padded.1} parent=0 // pred_fallthru
    _
  %v1466 = vld [vmem:[%s2] sm:$0xff]
  %v1467 = vld [vmem:[%s2 + $0x8] sm:$0xff]
  %v1468 = vld [vmem:[%s2 + $0x10] sm:$0xff]
  %v1469 = vld [vmem:[%s2 + $0x18] sm:$0xff]
  %v1470 = vld [vmem:[%s2 + $0x20] sm:$0xff]
  %v1471 = vld [vmem:[%s2 + $0x28] sm:$0xff]
  %v1472 = vld [vmem:[%s2 + $0x30] sm:$0xff]
  %v1473 = vld [vmem:[%s2 + $0x38] sm:$0xff]
  %v1474 = vld [vmem:[%s2 + $0x40] sm:$0xff]
  %v1475 = vld [vmem:[%s2 + $0x48] sm:$0xff]
  %v1476 = vld [vmem:[%s2 + $0x50] sm:$0xff]
  %v1477 = vld [vmem:[%s2 + $0x58] sm:$0xff]
  %v1478 = vld [vmem:[%s2 + $0x60] sm:$0xff]
  %v1479 = vld [vmem:[%s2 + $0x68] sm:$0xff]
  %v1480 = vld [vmem:[%s2 + $0x70] sm:$0xff]
  %v1481 = vld [vmem:[%s2 + $0x78] sm:$0xff]
  %v1482 = vadd.f32 %v1466, %v1352
  %v1483 = vadd.f32 %v1467, %v1358
  %v1484 = vadd.f32 %v1468, %v1364
  %v1485 = vadd.f32 %v1469, %v1370
  %v1486 = vadd.f32 %v1470, %v1376
  %v1487 = vadd.f32 %v1471, %v1382
  %v1488 = vadd.f32 %v1472, %v1388
  %v1489 = vadd.f32 %v1473, %v1394
  %v1490 = vadd.f32 %v1474, %v1400
  %v1491 = vadd.f32 %v1475, %v1406
  %v1492 = vadd.f32 %v1476, %v1412
  %v1493 = vadd.f32 %v1477, %v1418
  %v1494 = vadd.f32 %v1478, %v1424
  %v1495 = vadd.f32 %v1479, %v1430
  %v1496 = vadd.f32 %v1480, %v1436
  %v1497 = vadd.f32 %v1481, %v1442
  %vm1498 = vcmask 130048
  %1499 = vst.msk [vmem:[%s2] sm:$0xff] %vm1498, %v1482
  %1500 = vst.msk [vmem:[%s2 + $0x8] sm:$0xff] %vm1498, %v1483
  %1501 = vst.msk [vmem:[%s2 + $0x10] sm:$0xff] %vm1498, %v1484
  %1502 = vst.msk [vmem:[%s2 + $0x18] sm:$0xff] %vm1498, %v1485
  %1503 = vst.msk [vmem:[%s2 + $0x20] sm:$0xff] %vm1498, %v1486
  %1504 = vst.msk [vmem:[%s2 + $0x28] sm:$0xff] %vm1498, %v1487
  %1505 = vst.msk [vmem:[%s2 + $0x30] sm:$0xff] %vm1498, %v1488
  %1506 = vst.msk [vmem:[%s2 + $0x38] sm:$0xff] %vm1498, %v1489
  %1507 = vst.msk [vmem:[%s2 + $0x40] sm:$0xff] %vm1498, %v1490
  %1508 = vst.msk [vmem:[%s2 + $0x48] sm:$0xff] %vm1498, %v1491
  %1509 = vst.msk [vmem:[%s2 + $0x50] sm:$0xff] %vm1498, %v1492
  %1510 = vst.msk [vmem:[%s2 + $0x58] sm:$0xff] %vm1498, %v1493
  %1511 = vst.msk [vmem:[%s2 + $0x60] sm:$0xff] %vm1498, %v1494
  %1512 = vst.msk [vmem:[%s2 + $0x68] sm:$0xff] %vm1498, %v1495
  %1513 = vst.msk [vmem:[%s2 + $0x70] sm:$0xff] %vm1498, %v1496
  %1514 = vst.msk [vmem:[%s2 + $0x78] sm:$0xff] %vm1498, %v1497
  // Predicated region
  $region14: #{_poincare_lookup_padded.1} parent=0 // pred_check
    _
  $region15: #{_poincare_lookup_padded.1} parent=0 // pred_check_branch
    %1516 = sbr.rel (0) target = $region17
  $region16: #{_poincare_lookup_padded.1} parent=0 // pred_region
    _
  $region17: #{_poincare_lookup_padded.1} parent=0 // pred_fallthru
    _
  // Predicated region
  $region18: #{_poincare_lookup_padded.1} parent=0 // pred_check
    _
  $region19: #{_poincare_lookup_padded.1} parent=0 // pred_check_branch
    %1518 = sbr.rel (0) target = $region21
  $region20: #{_poincare_lookup_padded.1} parent=0 // pred_region
    _
  $region21: #{_poincare_lookup_padded.1} parent=0 // pred_fallthru
    _

</llo_original>
